<compile_context>
chip_gen: v5e
topology: v5e:2x2
jax: 0.10.0
libtpu: 0.0.40
codegen_flags: <defaults>
</compile_context>

<pallas_src>
import jax
import jax.numpy as jnp
from jax.experimental import pallas as pl
from jax.experimental.pallas import tpu as pltpu

# ----------------------------- configuration --------------------------------
B = 2                       # batch
DOWN_CONVS = [5, 8, 16]     # encoder channels  (input_nc=5, ncf=[8,16])
UP_CONVS = [16, 8, 4]       # decoder channels  (ncf reversed + nclasses=4)
POOLS = [16, 12]            # true edge counts per resolution level
LANES = 128                 # lane-dense padded edge width

N_DOWN = len(DOWN_CONVS) - 1    # 2 DownConvs
N_POOL = len(POOLS) - 1         # 1 pool / unpool level
N_UP = len(UP_CONVS) - 2        # 1 transfer UpConv (+ 1 final UpConv)

BIAS_COL = 127                  # bias lives in the last lane of each W block


def _ceil8(c):
    return ((c + 7) // 8) * 8


# --------------------- packed parameter-slab layout --------------------------
# One (SLAB_ROWS, 128) f32 slab holds every weight, bias, pool and unpool
# matrix.  Row offsets are compile-time constants shared by the host-side
# packer and the in-kernel static slices.
_LAYOUT = {}
_row = 0
for _l in range(N_POOL):
    _LAYOUT[f"pool{_l}"] = _row; _row += LANES
for _l in range(N_POOL):
    _LAYOUT[f"unroll{_l}"] = _row; _row += LANES
for _i in range(N_DOWN):
    _LAYOUT[f"d{_i}"] = _row; _row += _ceil8(DOWN_CONVS[_i + 1])
for _i in range(N_UP):
    _co = _ceil8(UP_CONVS[_i + 1])
    _LAYOUT[f"u{_i}_wu"] = _row; _row += _co
    _LAYOUT[f"u{_i}_wc"] = _row; _row += _co
_co = _ceil8(UP_CONVS[-1])
_LAYOUT["f_wu"] = _row; _row += _co
_LAYOUT["f_wc"] = _row; _row += _co
SLAB_ROWS = _ceil8(_row)            # 312 for this config


# --------------------------- in-kernel helpers -------------------------------
def _stack_features(x, e, lt_e):
    """MeshConv symmetric features stacked along the channel (sublane) axis.

    x: (C, LANES) with lanes >= e zero.  The 4 ring neighbors use the
    circulant map (i + k) % e; built from ONE wrapped-lane copy (1 roll +
    1 select) plus one roll per neighbor -> 5 rolls, 1 select total.
    """
    # x_wrap[:, j] = x[:, (j - e) % LANES]; for j in [e, e+4) that is x[:, j-e]
    x_wrap = pltpu.roll(x, shift=e, axis=1)
    x_ext = jnp.where(lt_e, x, x_wrap)          # lanes [e, e+4) hold x[:, 0:4]
    # n_k[:, i] = x_ext[:, (i + k) % LANES] == x[:, (i + k) % e] for i < e
    n1 = pltpu.roll(x_ext, shift=LANES - 1, axis=1)
    n2 = pltpu.roll(x_ext, shift=LANES - 2, axis=1)
    n3 = pltpu.roll(x_ext, shift=LANES - 3, axis=1)
    n4 = pltpu.roll(x_ext, shift=LANES - 4, axis=1)
    return jnp.concatenate(
        [x, n1 + n3, n2 + n4, jnp.abs(n1 - n3), jnp.abs(n2 - n4)], axis=0)


def _mesh_conv(x, w, b, e, lt_e, mask_e):
    """x: (Cin_p, LANES), w: (Cout_p, 5*Cin_p), b: (Cout_p, 1) -> masked out."""
    feats = _stack_features(x, e, lt_e)
    return (jnp.dot(w, feats, preferred_element_type=jnp.float32) + b) * mask_e


def _mesh_conv_split(x1, x2, wa, wb, b, e, lt_e, mask_e):
    """MeshConv over channel-concat(x1, x2) with the weight pre-split in two
    halves -- identical to conv(cat([x1, x2], ch)) without the concat."""
    acc = (jnp.dot(wa, _stack_features(x1, e, lt_e), preferred_element_type=jnp.float32)
           + jnp.dot(wb, _stack_features(x2, e, lt_e), preferred_element_type=jnp.float32)
           + b)
    return acc * mask_e


def _instnorm_relu(acc, e, mask_e):
    """InstanceNorm2d(affine=False, eps=1e-5) over the true e edges + ReLU.
    acc has zeros in padded lanes; output keeps that invariant.  sum and
    sum-of-squares are independent reductions (overlap on the XLU)."""
    inv_e = 1.0 / float(e)
    s1 = jnp.sum(acc, axis=1, keepdims=True)
    s2 = jnp.sum(acc * acc, axis=1, keepdims=True)
    mean = s1 * inv_e
    var = jnp.maximum(s2 * inv_e - mean * mean, 0.0)
    cen = (acc - mean) * mask_e
    return jnp.maximum(cen * jax.lax.rsqrt(var + 1e-5), 0.0)


# ------------------------------ fused kernel ---------------------------------
def _fused_forward_kernel(x_ref, slab_ref, o_ref):
    nb = x_ref.shape[0]          # batch elements resident in this grid step

    # ---- hoisted lane iota / masks (emitted once, reused by every layer) ----
    lane = jax.lax.broadcasted_iota(jnp.int32, (1, LANES), 1)
    lt = {e: lane < e for e in sorted(set(POOLS))}
    mf = {e: lt[e].astype(jnp.float32) for e in lt}

    # ---- load every parameter once from the packed slab (static slices) ----
    def w_at(name, cout_p, kcols, col0=0):
        r = _LAYOUT[name]
        return slab_ref[pl.ds(r, cout_p), pl.ds(col0, kcols)]

    def b_at(name, cout_p):
        r = _LAYOUT[name]
        return slab_ref[pl.ds(r, cout_p), pl.ds(BIAS_COL, 1)]

    pools_m = [slab_ref[pl.ds(_LAYOUT[f"pool{l}"], LANES), :] for l in range(N_POOL)]
    unrolls_m = [slab_ref[pl.ds(_LAYOUT[f"unroll{l}"], LANES), :] for l in range(N_POOL)]

    down_p = []
    for i in range(N_DOWN):
        cin_p, cout_p = _ceil8(DOWN_CONVS[i]), _ceil8(DOWN_CONVS[i + 1])
        down_p.append((w_at(f"d{i}", cout_p, 5 * cin_p), b_at(f"d{i}", cout_p)))

    up_p = []
    for i in range(N_UP):
        cin_p, cout_p = _ceil8(UP_CONVS[i]), _ceil8(UP_CONVS[i + 1])
        up_p.append((w_at(f"u{i}_wu", cout_p, 5 * cin_p),
                     b_at(f"u{i}_wu", cout_p),
                     w_at(f"u{i}_wc", cout_p, 5 * cout_p, col0=0),
                     w_at(f"u{i}_wc", cout_p, 5 * cout_p, col0=5 * cout_p),
                     b_at(f"u{i}_wc", cout_p)))

    fcin_p, fcout_p = _ceil8(UP_CONVS[-2]), _ceil8(UP_CONVS[-1])
    f_wu = w_at("f_wu", fcout_p, 5 * fcin_p)
    f_bu = b_at("f_wu", fcout_p)
    f_wc = w_at("f_wc", fcout_p, 5 * fcout_p)
    f_bc = b_at("f_wc", fcout_p)

    # ---- forward: one independent chain per resident batch element ----
    for bidx in range(nb):
        fe = x_ref[bidx]                       # (C0_pad, LANES)
        level = 0
        skips = []

        # ---------------- encoder (DownConv, blocks=0) ----------------
        for i in range(N_DOWN):
            w, bias = down_p[i]
            e = POOLS[level]
            fe = _instnorm_relu(_mesh_conv(fe, w, bias, e, lt[e], mf[e]), e, mf[e])
            if i + 1 < len(POOLS):
                skips.append(fe)               # before_pool skip feature
                # TODO(synk): real MeshPool is a dynamic, feature-driven edge
                # collapse (priority queue); modeled as a precomputed
                # averaging matrix applied on the MXU.
                fe = jnp.dot(fe, pools_m[level], preferred_element_type=jnp.float32)
                level += 1
            else:
                skips.append(None)

        # -------- decoder (UpConv, blocks=0, unroll + transfer_data) --------
        for i in range(N_UP):
            wu, bu, wca, wcb, bc = up_p[i]
            e = POOLS[level]
            x1 = _mesh_conv(fe, wu, bu, e, lt[e], mf[e])      # up_conv, no norm
            level -= 1
            x1 = jnp.dot(x1, unrolls_m[level],                # MeshUnpool matmul
                         preferred_element_type=jnp.float32)
            e = POOLS[level]
            from_down = skips[-(i + 2)]
            fe = _instnorm_relu(
                _mesh_conv_split(x1, from_down, wca, wcb, bc, e, lt[e], mf[e]),
                e, mf[e])

        # ------------- final UpConv (no unroll, no transfer) -------------
        e = POOLS[level]
        x1 = _mesh_conv(fe, f_wu, f_bu, e, lt[e], mf[e])
        fe = _instnorm_relu(_mesh_conv(x1, f_wc, f_bc, e, lt[e], mf[e]), e, mf[e])

        o_ref[bidx] = fe


# ------------------------------- wrapper -------------------------------------
def _tensorcores_per_chip():
    """2 on multi-TensorCore generations (v7x; v4 megacore), else 1."""
    try:
        kind = jax.devices()[0].device_kind.lower()
    except Exception:
        return 1
    return 2 if ("v7" in kind or "v4" in kind) else 1


@jax.jit
def mesh_encoder_decoder(x_pad, slab):
    """x_pad: (B, ceil8(C_in), LANES) with channels >= C_in and lanes >=
    POOLS[0] zeroed.  slab: (SLAB_ROWS, LANES) packed parameters."""
    bsz = x_pad.shape[0]
    c0p = x_pad.shape[1]
    coutp = _ceil8(UP_CONVS[-1])

    if _tensorcores_per_chip() >= 2 and bsz > 1:
        # Multi-TC chip (v7x): one batch element per grid step, shards across TCs.
        grid = (bsz,)
        x_spec = pl.BlockSpec((1, c0p, LANES), lambda i: (i, 0, 0))
        o_spec = pl.BlockSpec((1, coutp, LANES), lambda i: (i, 0, 0))
        dims = ("parallel",)
    else:
        # Single-TC chip (v5e / v6e): collapse the batch into one grid step and
        # unroll it in-kernel (two independent chains for the scheduler).
        grid = (1,)
        x_spec = pl.BlockSpec((bsz, c0p, LANES), lambda i: (0, 0, 0))
        o_spec = pl.BlockSpec((bsz, coutp, LANES), lambda i: (0, 0, 0))
        dims = ("arbitrary",)

    slab_spec = pl.BlockSpec((SLAB_ROWS, LANES), lambda i: (0, 0))

    out = pl.pallas_call(
        _fused_forward_kernel,
        out_shape=jax.ShapeDtypeStruct((bsz, coutp, LANES), jnp.float32),
        grid=grid,
        in_specs=[x_spec, slab_spec],
        out_specs=o_spec,
        compiler_params=pltpu.CompilerParams(dimension_semantics=dims),
    )(x_pad, slab)
    return out[:, :UP_CONVS[-1], :POOLS[0]]      # strip channel / lane padding


# --------------------------- synthetic mesh data ------------------------------
def build_mesh():
    """Deterministic synthetic mesh: lane-padded pooling / unrolling matrices.
    TODO(synk): a real MeshCNN gemm needs an actual connectivity gather; the
    circulant (i + k) % E neighbor map realized via pltpu.roll is a synthetic
    stand-in."""
    pool_mats, unroll_mats = [], []
    for lvl in range(N_POOL):
        e0, e1 = POOLS[lvl], POOLS[lvl + 1]
        parent = (jnp.arange(e0) * e1) // e0                    # group assignment
        onehot = jax.nn.one_hot(parent, e1, dtype=jnp.float32)  # (e0, e1)
        counts = jnp.sum(onehot, axis=0, keepdims=True)
        pool_true = onehot / counts                             # averaging pool
        unroll_true = onehot.T                                  # copy unpool
        pool_mats.append(
            jnp.zeros((LANES, LANES), jnp.float32).at[:e0, :e1].set(pool_true))
        unroll_mats.append(
            jnp.zeros((LANES, LANES), jnp.float32).at[:e1, :e0].set(unroll_true))
    return pool_mats, unroll_mats


# ------------------------------ parameters ------------------------------------
def _put_w(slab, row, w, cin_pad, col0=0):
    """w: (5, cout, cin), packed k-major into rows [row, row+cout),
    cols [col0 + k*cin_pad, col0 + k*cin_pad + cin) — matches the in-kernel
    feature-major channel stacking with sublane-aligned channel padding.
    TODO(synk): a trained PyTorch checkpoint flattens (Cout, Cin, 1, 5)
    Cin-major; reorder here if bit-exact checkpoint parity is ever needed."""
    _, cout, cin = w.shape
    for k in range(5):
        c0 = col0 + k * cin_pad
        slab = slab.at[row:row + cout, c0:c0 + cin].set(w[k])
    return slab


def build_param_slab(key):
    """xavier_normal conv weights (gain 1, fans from the (1,5) kernel),
    zero biases, all packed into a single (SLAB_ROWS, LANES) f32 slab."""
    def conv_w(k, cin, cout):
        std = (2.0 / (5 * cin + 5 * cout)) ** 0.5
        return std * jax.random.normal(k, (5, cout, cin), dtype=jnp.float32)

    slab = jnp.zeros((SLAB_ROWS, LANES), jnp.float32)
    pool_mats, unroll_mats = build_mesh()
    for lvl in range(N_POOL):
        r = _LAYOUT[f"pool{lvl}"]
        slab = slab.at[r:r + LANES, :].set(pool_mats[lvl])
        r = _LAYOUT[f"unroll{lvl}"]
        slab = slab.at[r:r + LANES, :].set(unroll_mats[lvl])

    keys = iter(jax.random.split(key, 32))
    # encoder DownConvs (biases are zero: slab stays zero at BIAS_COL)
    for i in range(N_DOWN):
        cin, cout = DOWN_CONVS[i], DOWN_CONVS[i + 1]
        slab = _put_w(slab, _LAYOUT[f"d{i}"], conv_w(next(keys), cin, cout),
                      _ceil8(cin))
    # decoder UpConvs with transfer_data: conv1 weight split into two halves
    for i in range(N_UP):
        cin, cout = UP_CONVS[i], UP_CONVS[i + 1]
        wu = conv_w(next(keys), cin, cout)                 # up_conv
        wc = conv_w(next(keys), 2 * cout, cout)            # conv1 over concat
        slab = _put_w(slab, _LAYOUT[f"u{i}_wu"], wu, _ceil8(cin))
        slab = _put_w(slab, _LAYOUT[f"u{i}_wc"], wc[:, :, :cout],
                      _ceil8(cout), col0=0)
        slab = _put_w(slab, _LAYOUT[f"u{i}_wc"], wc[:, :, cout:],
                      _ceil8(cout), col0=5 * _ceil8(cout))
    # final UpConv (no transfer)
    cin, cout = UP_CONVS[-2], UP_CONVS[-1]
    slab = _put_w(slab, _LAYOUT["f_wu"], conv_w(next(keys), cin, cout), _ceil8(cin))
    slab = _put_w(slab, _LAYOUT["f_wc"], conv_w(next(keys), cout, cout), _ceil8(cout))
    return slab


# ---------------------------------- main ---------------------------------------
if __name__ == "__main__":
    key = jax.random.PRNGKey(0)
    k_x, k_p = jax.random.split(key)

    x = jax.random.normal(k_x, (B, DOWN_CONVS[0], POOLS[0]), dtype=jnp.float32)
    x_pad = jnp.zeros((B, _ceil8(DOWN_CONVS[0]), LANES), jnp.float32)
    x_pad = x_pad.at[:, :DOWN_CONVS[0], :POOLS[0]].set(x)

    slab = build_param_slab(k_p)

    out = mesh_encoder_decoder(x_pad, slab)
    out = jax.block_until_ready(out)

    assert out.shape == (B, UP_CONVS[-1], POOLS[0]), out.shape
    assert bool(jnp.all(jnp.isfinite(out)))
    print("KERNEL_OK")
</pallas_src>

<mosaic_0001>
module attributes {stable_mosaic.version = 11 : i64} {
  func.func @_fused_forward_kernel(%arg0: i32, %arg1: memref<2x8x128xf32, #tpu.memory_space<vmem>>, %arg2: memref<312x128xf32, #tpu.memory_space<vmem>>, %arg3: memref<2x8x128xf32, #tpu.memory_space<vmem>>) attributes {dimension_semantics = [#tpu.dimension_semantics<arbitrary>], iteration_bounds = array<i64: 1>, scalar_prefetch = 0 : i64, scratch_operands = 0 : i64, tpu.core_type = #tpu.core_type<tc>, window_params = [{pipeline_mode = #tpu.pipeline_mode<synchronous>, transform_indices = @transform_0, window_bounds = array<i64: 2, 8, 128>}, {pipeline_mode = #tpu.pipeline_mode<synchronous>, transform_indices = @transform_1, window_bounds = array<i64: 312, 128>}, {pipeline_mode = #tpu.pipeline_mode<synchronous>, transform_indices = @transform_2, window_bounds = array<i64: 2, 8, 128>}]} {
    %0 = tpu.iota {dimensions = array<i32: 1>} : vector<1x128xi32>
    %c12_i32 = arith.constant 12 : i32
    %1 = vector.broadcast %c12_i32 : i32 to vector<1x128xi32>
    %2 = arith.cmpi slt, %0, %1 : vector<1x128xi32>
    %c16_i32 = arith.constant 16 : i32
    %3 = vector.broadcast %c16_i32 : i32 to vector<1x128xi32>
    %4 = arith.cmpi slt, %0, %3 : vector<1x128xi32>
    %5 = arith.extui %2 : vector<1x128xi1> to vector<1x128xi32>
    %6 = arith.sitofp %5 : vector<1x128xi32> to vector<1x128xf32>
    %7 = arith.extui %4 : vector<1x128xi1> to vector<1x128xi32>
    %8 = arith.sitofp %7 : vector<1x128xi32> to vector<1x128xf32>
    %c0 = arith.constant 0 : index
    %c0_0 = arith.constant 0 : index
    %9 = vector.load %arg2[%c0, %c0_0] : memref<312x128xf32, #tpu.memory_space<vmem>>, vector<128x128xf32>
    %c128 = arith.constant 128 : index
    %c0_1 = arith.constant 0 : index
    %10 = vector.load %arg2[%c128, %c0_1] : memref<312x128xf32, #tpu.memory_space<vmem>>, vector<128x128xf32>
    %c256 = arith.constant 256 : index
    %c0_2 = arith.constant 0 : index
    %11 = vector.load %arg2[%c256, %c0_2] : memref<312x128xf32, #tpu.memory_space<vmem>>, vector<8x40xf32>
    %c256_3 = arith.constant 256 : index
    %c127 = arith.constant 127 : index
    %12 = vector.load %arg2[%c256_3, %c127] : memref<312x128xf32, #tpu.memory_space<vmem>>, vector<8x1xf32>
    %c264 = arith.constant 264 : index
    %c0_4 = arith.constant 0 : index
    %13 = vector.load %arg2[%c264, %c0_4] : memref<312x128xf32, #tpu.memory_space<vmem>>, vector<16x40xf32>
    %c264_5 = arith.constant 264 : index
    %c127_6 = arith.constant 127 : index
    %14 = vector.load %arg2[%c264_5, %c127_6] : memref<312x128xf32, #tpu.memory_space<vmem>>, vector<16x1xf32>
    %c280 = arith.constant 280 : index
    %c0_7 = arith.constant 0 : index
    %15 = vector.load %arg2[%c280, %c0_7] : memref<312x128xf32, #tpu.memory_space<vmem>>, vector<8x80xf32>
    %c280_8 = arith.constant 280 : index
    %c127_9 = arith.constant 127 : index
    %16 = vector.load %arg2[%c280_8, %c127_9] : memref<312x128xf32, #tpu.memory_space<vmem>>, vector<8x1xf32>
    %c288 = arith.constant 288 : index
    %c0_10 = arith.constant 0 : index
    %17 = vector.load %arg2[%c288, %c0_10] : memref<312x128xf32, #tpu.memory_space<vmem>>, vector<8x40xf32>
    %c288_11 = arith.constant 288 : index
    %c40 = arith.constant 40 : index
    %18 = vector.load %arg2[%c288_11, %c40] : memref<312x128xf32, #tpu.memory_space<vmem>>, vector<8x40xf32>
    %c288_12 = arith.constant 288 : index
    %c127_13 = arith.constant 127 : index
    %19 = vector.load %arg2[%c288_12, %c127_13] : memref<312x128xf32, #tpu.memory_space<vmem>>, vector<8x1xf32>
    %c296 = arith.constant 296 : index
    %c0_14 = arith.constant 0 : index
    %20 = vector.load %arg2[%c296, %c0_14] : memref<312x128xf32, #tpu.memory_space<vmem>>, vector<8x40xf32>
    %c296_15 = arith.constant 296 : index
    %c127_16 = arith.constant 127 : index
    %21 = vector.load %arg2[%c296_15, %c127_16] : memref<312x128xf32, #tpu.memory_space<vmem>>, vector<8x1xf32>
    %c304 = arith.constant 304 : index
    %c0_17 = arith.constant 0 : index
    %22 = vector.load %arg2[%c304, %c0_17] : memref<312x128xf32, #tpu.memory_space<vmem>>, vector<8x40xf32>
    %c304_18 = arith.constant 304 : index
    %c127_19 = arith.constant 127 : index
    %23 = vector.load %arg2[%c304_18, %c127_19] : memref<312x128xf32, #tpu.memory_space<vmem>>, vector<8x1xf32>
    %c0_20 = arith.constant 0 : index
    %c0_21 = arith.constant 0 : index
    %c0_22 = arith.constant 0 : index
    %24 = vector.load %arg1[%c0_20, %c0_21, %c0_22] : memref<2x8x128xf32, #tpu.memory_space<vmem>>, vector<1x8x128xf32>
    %25 = vector.shape_cast %24 : vector<1x8x128xf32> to vector<8x128xf32>
    %c16_i32_23 = arith.constant 16 : i32
    %26 = tpu.dynamic_rotate %25 by %c16_i32_23 dim 1 : vector<8x128xf32>, i32 -> vector<8x128xf32>
    %27 = vector.shape_cast %4 : vector<1x128xi1> to vector<1x128xi1>
    %28 = vector.broadcast %27 : vector<1x128xi1> to vector<8x128xi1>
    %29 = arith.select %28, %25, %26 : vector<8x128xi1>, vector<8x128xf32>
    %c127_i32 = arith.constant 127 : i32
    %30 = tpu.dynamic_rotate %29 by %c127_i32 dim 1 : vector<8x128xf32>, i32 -> vector<8x128xf32>
    %c126_i32 = arith.constant 126 : i32
    %31 = tpu.dynamic_rotate %29 by %c126_i32 dim 1 : vector<8x128xf32>, i32 -> vector<8x128xf32>
    %c125_i32 = arith.constant 125 : i32
    %32 = tpu.dynamic_rotate %29 by %c125_i32 dim 1 : vector<8x128xf32>, i32 -> vector<8x128xf32>
    %c124_i32 = arith.constant 124 : i32
    %33 = tpu.dynamic_rotate %29 by %c124_i32 dim 1 : vector<8x128xf32>, i32 -> vector<8x128xf32>
    %34 = arith.addf %30, %32 : vector<8x128xf32>
    %35 = arith.addf %31, %33 : vector<8x128xf32>
    %36 = arith.subf %30, %32 : vector<8x128xf32>
    %37 = math.absf %36 : vector<8x128xf32>
    %38 = arith.subf %31, %33 : vector<8x128xf32>
    %39 = math.absf %38 : vector<8x128xf32>
    %40 = tpu.concatenate %25, %34, %35, %37, %39 in 0 : vector<8x128xf32>, vector<8x128xf32>, vector<8x128xf32>, vector<8x128xf32>, vector<8x128xf32> -> vector<40x128xf32>
    %cst = arith.constant dense<0.000000e+00> : vector<8x128xf32>
    %41 = tpu.matmul %11, %40, %cst {dimension_numbers = #tpu.dot_dimension_numbers<[1], [0], [0], [1], [0, 0, 1, 1], [], []>} : vector<8x40xf32>, vector<40x128xf32>, vector<8x128xf32> -> vector<8x128xf32>
    %42 = vector.broadcast %12 : vector<8x1xf32> to vector<8x128xf32>
    %43 = arith.addf %41, %42 : vector<8x128xf32>
    %44 = vector.broadcast %8 : vector<1x128xf32> to vector<8x128xf32>
    %45 = arith.mulf %43, %44 : vector<8x128xf32>
    %cst_24 = arith.constant dense<0.000000e+00> : vector<8xf32>
    %46 = vector.multi_reduction <add>, %45, %cst_24 [1] : vector<8x128xf32> to vector<8xf32>
    %47 = vector.shape_cast %46 : vector<8xf32> to vector<8x1xf32>
    %48 = arith.mulf %45, %45 : vector<8x128xf32>
    %cst_25 = arith.constant dense<0.000000e+00> : vector<8xf32>
    %49 = vector.multi_reduction <add>, %48, %cst_25 [1] : vector<8x128xf32> to vector<8xf32>
    %50 = vector.shape_cast %49 : vector<8xf32> to vector<8x1xf32>
    %cst_26 = arith.constant 6.250000e-02 : f32
    %51 = vector.broadcast %cst_26 : f32 to vector<8x1xf32>
    %52 = arith.mulf %47, %51 : vector<8x1xf32>
    %cst_27 = arith.constant 6.250000e-02 : f32
    %53 = vector.broadcast %cst_27 : f32 to vector<8x1xf32>
    %54 = arith.mulf %50, %53 : vector<8x1xf32>
    %55 = arith.mulf %52, %52 : vector<8x1xf32>
    %56 = arith.subf %54, %55 : vector<8x1xf32>
    %cst_28 = arith.constant 0.000000e+00 : f32
    %57 = vector.broadcast %cst_28 : f32 to vector<8x1xf32>
    %58 = arith.maximumf %56, %57 : vector<8x1xf32>
    %59 = vector.broadcast %52 : vector<8x1xf32> to vector<8x128xf32>
    %60 = arith.subf %45, %59 : vector<8x128xf32>
    %61 = vector.broadcast %8 : vector<1x128xf32> to vector<8x128xf32>
    %62 = arith.mulf %60, %61 : vector<8x128xf32>
    %cst_29 = arith.constant 9.99999974E-6 : f32
    %63 = vector.broadcast %cst_29 : f32 to vector<8x1xf32>
    %64 = arith.addf %58, %63 : vector<8x1xf32>
    %65 = math.rsqrt %64 : vector<8x1xf32>
    %66 = vector.broadcast %65 : vector<8x1xf32> to vector<8x128xf32>
    %67 = arith.mulf %62, %66 : vector<8x128xf32>
    %cst_30 = arith.constant 0.000000e+00 : f32
    %68 = vector.broadcast %cst_30 : f32 to vector<8x128xf32>
    %69 = arith.maximumf %67, %68 : vector<8x128xf32>
    %cst_31 = arith.constant dense<0.000000e+00> : vector<8x128xf32>
    %70 = tpu.matmul %69, %9, %cst_31 {dimension_numbers = #tpu.dot_dimension_numbers<[1], [0], [0], [1], [0, 0, 1, 1], [], []>} : vector<8x128xf32>, vector<128x128xf32>, vector<8x128xf32> -> vector<8x128xf32>
    %c12_i32_32 = arith.constant 12 : i32
    %71 = tpu.dynamic_rotate %70 by %c12_i32_32 dim 1 : vector<8x128xf32>, i32 -> vector<8x128xf32>
    %72 = vector.shape_cast %2 : vector<1x128xi1> to vector<1x128xi1>
    %73 = vector.broadcast %72 : vector<1x128xi1> to vector<8x128xi1>
    %74 = arith.select %73, %70, %71 : vector<8x128xi1>, vector<8x128xf32>
    %c127_i32_33 = arith.constant 127 : i32
    %75 = tpu.dynamic_rotate %74 by %c127_i32_33 dim 1 : vector<8x128xf32>, i32 -> vector<8x128xf32>
    %c126_i32_34 = arith.constant 126 : i32
    %76 = tpu.dynamic_rotate %74 by %c126_i32_34 dim 1 : vector<8x128xf32>, i32 -> vector<8x128xf32>
    %c125_i32_35 = arith.constant 125 : i32
    %77 = tpu.dynamic_rotate %74 by %c125_i32_35 dim 1 : vector<8x128xf32>, i32 -> vector<8x128xf32>
    %c124_i32_36 = arith.constant 124 : i32
    %78 = tpu.dynamic_rotate %74 by %c124_i32_36 dim 1 : vector<8x128xf32>, i32 -> vector<8x128xf32>
    %79 = arith.addf %75, %77 : vector<8x128xf32>
    %80 = arith.addf %76, %78 : vector<8x128xf32>
    %81 = arith.subf %75, %77 : vector<8x128xf32>
    %82 = math.absf %81 : vector<8x128xf32>
    %83 = arith.subf %76, %78 : vector<8x128xf32>
    %84 = math.absf %83 : vector<8x128xf32>
    %85 = tpu.concatenate %70, %79, %80, %82, %84 in 0 : vector<8x128xf32>, vector<8x128xf32>, vector<8x128xf32>, vector<8x128xf32>, vector<8x128xf32> -> vector<40x128xf32>
    %cst_37 = arith.constant dense<0.000000e+00> : vector<16x128xf32>
    %86 = tpu.matmul %13, %85, %cst_37 {dimension_numbers = #tpu.dot_dimension_numbers<[1], [0], [0], [1], [0, 0, 1, 1], [], []>} : vector<16x40xf32>, vector<40x128xf32>, vector<16x128xf32> -> vector<16x128xf32>
    %87 = vector.broadcast %14 : vector<16x1xf32> to vector<16x128xf32>
    %88 = arith.addf %86, %87 : vector<16x128xf32>
    %89 = vector.broadcast %6 : vector<1x128xf32> to vector<16x128xf32>
    %90 = arith.mulf %88, %89 : vector<16x128xf32>
    %cst_38 = arith.constant dense<0.000000e+00> : vector<16xf32>
    %91 = vector.multi_reduction <add>, %90, %cst_38 [1] : vector<16x128xf32> to vector<16xf32>
    %92 = vector.shape_cast %91 : vector<16xf32> to vector<16x1xf32>
    %93 = arith.mulf %90, %90 : vector<16x128xf32>
    %cst_39 = arith.constant dense<0.000000e+00> : vector<16xf32>
    %94 = vector.multi_reduction <add>, %93, %cst_39 [1] : vector<16x128xf32> to vector<16xf32>
    %95 = vector.shape_cast %94 : vector<16xf32> to vector<16x1xf32>
    %cst_40 = arith.constant 0.0833333358 : f32
    %96 = vector.broadcast %cst_40 : f32 to vector<16x1xf32>
    %97 = arith.mulf %92, %96 : vector<16x1xf32>
    %cst_41 = arith.constant 0.0833333358 : f32
    %98 = vector.broadcast %cst_41 : f32 to vector<16x1xf32>
    %99 = arith.mulf %95, %98 : vector<16x1xf32>
    %100 = arith.mulf %97, %97 : vector<16x1xf32>
    %101 = arith.subf %99, %100 : vector<16x1xf32>
    %cst_42 = arith.constant 0.000000e+00 : f32
    %102 = vector.broadcast %cst_42 : f32 to vector<16x1xf32>
    %103 = arith.maximumf %101, %102 : vector<16x1xf32>
    %104 = vector.broadcast %97 : vector<16x1xf32> to vector<16x128xf32>
    %105 = arith.subf %90, %104 : vector<16x128xf32>
    %106 = vector.broadcast %6 : vector<1x128xf32> to vector<16x128xf32>
    %107 = arith.mulf %105, %106 : vector<16x128xf32>
    %cst_43 = arith.constant 9.99999974E-6 : f32
    %108 = vector.broadcast %cst_43 : f32 to vector<16x1xf32>
    %109 = arith.addf %103, %108 : vector<16x1xf32>
    %110 = math.rsqrt %109 : vector<16x1xf32>
    %111 = vector.broadcast %110 : vector<16x1xf32> to vector<16x128xf32>
    %112 = arith.mulf %107, %111 : vector<16x128xf32>
    %cst_44 = arith.constant 0.000000e+00 : f32
    %113 = vector.broadcast %cst_44 : f32 to vector<16x128xf32>
    %114 = arith.maximumf %112, %113 : vector<16x128xf32>
    %c12_i32_45 = arith.constant 12 : i32
    %115 = tpu.dynamic_rotate %114 by %c12_i32_45 dim 1 : vector<16x128xf32>, i32 -> vector<16x128xf32>
    %116 = vector.shape_cast %2 : vector<1x128xi1> to vector<1x128xi1>
    %117 = vector.broadcast %116 : vector<1x128xi1> to vector<16x128xi1>
    %118 = arith.select %117, %114, %115 : vector<16x128xi1>, vector<16x128xf32>
    %c127_i32_46 = arith.constant 127 : i32
    %119 = tpu.dynamic_rotate %118 by %c127_i32_46 dim 1 : vector<16x128xf32>, i32 -> vector<16x128xf32>
    %c126_i32_47 = arith.constant 126 : i32
    %120 = tpu.dynamic_rotate %118 by %c126_i32_47 dim 1 : vector<16x128xf32>, i32 -> vector<16x128xf32>
    %c125_i32_48 = arith.constant 125 : i32
    %121 = tpu.dynamic_rotate %118 by %c125_i32_48 dim 1 : vector<16x128xf32>, i32 -> vector<16x128xf32>
    %c124_i32_49 = arith.constant 124 : i32
    %122 = tpu.dynamic_rotate %118 by %c124_i32_49 dim 1 : vector<16x128xf32>, i32 -> vector<16x128xf32>
    %123 = arith.addf %119, %121 : vector<16x128xf32>
    %124 = arith.addf %120, %122 : vector<16x128xf32>
    %125 = arith.subf %119, %121 : vector<16x128xf32>
    %126 = math.absf %125 : vector<16x128xf32>
    %127 = arith.subf %120, %122 : vector<16x128xf32>
    %128 = math.absf %127 : vector<16x128xf32>
    %129 = tpu.concatenate %114, %123, %124, %126, %128 in 0 : vector<16x128xf32>, vector<16x128xf32>, vector<16x128xf32>, vector<16x128xf32>, vector<16x128xf32> -> vector<80x128xf32>
    %cst_50 = arith.constant dense<0.000000e+00> : vector<8x128xf32>
    %130 = tpu.matmul %15, %129, %cst_50 {dimension_numbers = #tpu.dot_dimension_numbers<[1], [0], [0], [1], [0, 0, 1, 1], [], []>} : vector<8x80xf32>, vector<80x128xf32>, vector<8x128xf32> -> vector<8x128xf32>
    %131 = vector.broadcast %16 : vector<8x1xf32> to vector<8x128xf32>
    %132 = arith.addf %130, %131 : vector<8x128xf32>
    %133 = vector.broadcast %6 : vector<1x128xf32> to vector<8x128xf32>
    %134 = arith.mulf %132, %133 : vector<8x128xf32>
    %cst_51 = arith.constant dense<0.000000e+00> : vector<8x128xf32>
    %135 = tpu.matmul %134, %10, %cst_51 {dimension_numbers = #tpu.dot_dimension_numbers<[1], [0], [0], [1], [0, 0, 1, 1], [], []>} : vector<8x128xf32>, vector<128x128xf32>, vector<8x128xf32> -> vector<8x128xf32>
    %c16_i32_52 = arith.constant 16 : i32
    %136 = tpu.dynamic_rotate %135 by %c16_i32_52 dim 1 : vector<8x128xf32>, i32 -> vector<8x128xf32>
    %137 = vector.shape_cast %4 : vector<1x128xi1> to vector<1x128xi1>
    %138 = vector.broadcast %137 : vector<1x128xi1> to vector<8x128xi1>
    %139 = arith.select %138, %135, %136 : vector<8x128xi1>, vector<8x128xf32>
    %c127_i32_53 = arith.constant 127 : i32
    %140 = tpu.dynamic_rotate %139 by %c127_i32_53 dim 1 : vector<8x128xf32>, i32 -> vector<8x128xf32>
    %c126_i32_54 = arith.constant 126 : i32
    %141 = tpu.dynamic_rotate %139 by %c126_i32_54 dim 1 : vector<8x128xf32>, i32 -> vector<8x128xf32>
    %c125_i32_55 = arith.constant 125 : i32
    %142 = tpu.dynamic_rotate %139 by %c125_i32_55 dim 1 : vector<8x128xf32>, i32 -> vector<8x128xf32>
    %c124_i32_56 = arith.constant 124 : i32
    %143 = tpu.dynamic_rotate %139 by %c124_i32_56 dim 1 : vector<8x128xf32>, i32 -> vector<8x128xf32>
    %144 = arith.addf %140, %142 : vector<8x128xf32>
    %145 = arith.addf %141, %143 : vector<8x128xf32>
    %146 = arith.subf %140, %142 : vector<8x128xf32>
    %147 = math.absf %146 : vector<8x128xf32>
    %148 = arith.subf %141, %143 : vector<8x128xf32>
    %149 = math.absf %148 : vector<8x128xf32>
    %150 = tpu.concatenate %135, %144, %145, %147, %149 in 0 : vector<8x128xf32>, vector<8x128xf32>, vector<8x128xf32>, vector<8x128xf32>, vector<8x128xf32> -> vector<40x128xf32>
    %cst_57 = arith.constant dense<0.000000e+00> : vector<8x128xf32>
    %151 = tpu.matmul %17, %150, %cst_57 {dimension_numbers = #tpu.dot_dimension_numbers<[1], [0], [0], [1], [0, 0, 1, 1], [], []>} : vector<8x40xf32>, vector<40x128xf32>, vector<8x128xf32> -> vector<8x128xf32>
    %c16_i32_58 = arith.constant 16 : i32
    %152 = tpu.dynamic_rotate %69 by %c16_i32_58 dim 1 : vector<8x128xf32>, i32 -> vector<8x128xf32>
    %153 = vector.shape_cast %4 : vector<1x128xi1> to vector<1x128xi1>
    %154 = vector.broadcast %153 : vector<1x128xi1> to vector<8x128xi1>
    %155 = arith.select %154, %69, %152 : vector<8x128xi1>, vector<8x128xf32>
    %c127_i32_59 = arith.constant 127 : i32
    %156 = tpu.dynamic_rotate %155 by %c127_i32_59 dim 1 : vector<8x128xf32>, i32 -> vector<8x128xf32>
    %c126_i32_60 = arith.constant 126 : i32
    %157 = tpu.dynamic_rotate %155 by %c126_i32_60 dim 1 : vector<8x128xf32>, i32 -> vector<8x128xf32>
    %c125_i32_61 = arith.constant 125 : i32
    %158 = tpu.dynamic_rotate %155 by %c125_i32_61 dim 1 : vector<8x128xf32>, i32 -> vector<8x128xf32>
    %c124_i32_62 = arith.constant 124 : i32
    %159 = tpu.dynamic_rotate %155 by %c124_i32_62 dim 1 : vector<8x128xf32>, i32 -> vector<8x128xf32>
    %160 = arith.addf %156, %158 : vector<8x128xf32>
    %161 = arith.addf %157, %159 : vector<8x128xf32>
    %162 = arith.subf %156, %158 : vector<8x128xf32>
    %163 = math.absf %162 : vector<8x128xf32>
    %164 = arith.subf %157, %159 : vector<8x128xf32>
    %165 = math.absf %164 : vector<8x128xf32>
    %166 = tpu.concatenate %69, %160, %161, %163, %165 in 0 : vector<8x128xf32>, vector<8x128xf32>, vector<8x128xf32>, vector<8x128xf32>, vector<8x128xf32> -> vector<40x128xf32>
    %cst_63 = arith.constant dense<0.000000e+00> : vector<8x128xf32>
    %167 = tpu.matmul %18, %166, %cst_63 {dimension_numbers = #tpu.dot_dimension_numbers<[1], [0], [0], [1], [0, 0, 1, 1], [], []>} : vector<8x40xf32>, vector<40x128xf32>, vector<8x128xf32> -> vector<8x128xf32>
    %168 = arith.addf %151, %167 : vector<8x128xf32>
    %169 = vector.broadcast %19 : vector<8x1xf32> to vector<8x128xf32>
    %170 = arith.addf %168, %169 : vector<8x128xf32>
    %171 = vector.broadcast %8 : vector<1x128xf32> to vector<8x128xf32>
    %172 = arith.mulf %170, %171 : vector<8x128xf32>
    %cst_64 = arith.constant dense<0.000000e+00> : vector<8xf32>
    %173 = vector.multi_reduction <add>, %172, %cst_64 [1] : vector<8x128xf32> to vector<8xf32>
    %174 = vector.shape_cast %173 : vector<8xf32> to vector<8x1xf32>
    %175 = arith.mulf %172, %172 : vector<8x128xf32>
    %cst_65 = arith.constant dense<0.000000e+00> : vector<8xf32>
    %176 = vector.multi_reduction <add>, %175, %cst_65 [1] : vector<8x128xf32> to vector<8xf32>
    %177 = vector.shape_cast %176 : vector<8xf32> to vector<8x1xf32>
    %cst_66 = arith.constant 6.250000e-02 : f32
    %178 = vector.broadcast %cst_66 : f32 to vector<8x1xf32>
    %179 = arith.mulf %174, %178 : vector<8x1xf32>
    %cst_67 = arith.constant 6.250000e-02 : f32
    %180 = vector.broadcast %cst_67 : f32 to vector<8x1xf32>
    %181 = arith.mulf %177, %180 : vector<8x1xf32>
    %182 = arith.mulf %179, %179 : vector<8x1xf32>
    %183 = arith.subf %181, %182 : vector<8x1xf32>
    %cst_68 = arith.constant 0.000000e+00 : f32
    %184 = vector.broadcast %cst_68 : f32 to vector<8x1xf32>
    %185 = arith.maximumf %183, %184 : vector<8x1xf32>
    %186 = vector.broadcast %179 : vector<8x1xf32> to vector<8x128xf32>
    %187 = arith.subf %172, %186 : vector<8x128xf32>
    %188 = vector.broadcast %8 : vector<1x128xf32> to vector<8x128xf32>
    %189 = arith.mulf %187, %188 : vector<8x128xf32>
    %cst_69 = arith.constant 9.99999974E-6 : f32
    %190 = vector.broadcast %cst_69 : f32 to vector<8x1xf32>
    %191 = arith.addf %185, %190 : vector<8x1xf32>
    %192 = math.rsqrt %191 : vector<8x1xf32>
    %193 = vector.broadcast %192 : vector<8x1xf32> to vector<8x128xf32>
    %194 = arith.mulf %189, %193 : vector<8x128xf32>
    %cst_70 = arith.constant 0.000000e+00 : f32
    %195 = vector.broadcast %cst_70 : f32 to vector<8x128xf32>
    %196 = arith.maximumf %194, %195 : vector<8x128xf32>
    %c16_i32_71 = arith.constant 16 : i32
    %197 = tpu.dynamic_rotate %196 by %c16_i32_71 dim 1 : vector<8x128xf32>, i32 -> vector<8x128xf32>
    %198 = vector.shape_cast %4 : vector<1x128xi1> to vector<1x128xi1>
    %199 = vector.broadcast %198 : vector<1x128xi1> to vector<8x128xi1>
    %200 = arith.select %199, %196, %197 : vector<8x128xi1>, vector<8x128xf32>
    %c127_i32_72 = arith.constant 127 : i32
    %201 = tpu.dynamic_rotate %200 by %c127_i32_72 dim 1 : vector<8x128xf32>, i32 -> vector<8x128xf32>
    %c126_i32_73 = arith.constant 126 : i32
    %202 = tpu.dynamic_rotate %200 by %c126_i32_73 dim 1 : vector<8x128xf32>, i32 -> vector<8x128xf32>
    %c125_i32_74 = arith.constant 125 : i32
    %203 = tpu.dynamic_rotate %200 by %c125_i32_74 dim 1 : vector<8x128xf32>, i32 -> vector<8x128xf32>
    %c124_i32_75 = arith.constant 124 : i32
    %204 = tpu.dynamic_rotate %200 by %c124_i32_75 dim 1 : vector<8x128xf32>, i32 -> vector<8x128xf32>
    %205 = arith.addf %201, %203 : vector<8x128xf32>
    %206 = arith.addf %202, %204 : vector<8x128xf32>
    %207 = arith.subf %201, %203 : vector<8x128xf32>
    %208 = math.absf %207 : vector<8x128xf32>
    %209 = arith.subf %202, %204 : vector<8x128xf32>
    %210 = math.absf %209 : vector<8x128xf32>
    %211 = tpu.concatenate %196, %205, %206, %208, %210 in 0 : vector<8x128xf32>, vector<8x128xf32>, vector<8x128xf32>, vector<8x128xf32>, vector<8x128xf32> -> vector<40x128xf32>
    %cst_76 = arith.constant dense<0.000000e+00> : vector<8x128xf32>
    %212 = tpu.matmul %20, %211, %cst_76 {dimension_numbers = #tpu.dot_dimension_numbers<[1], [0], [0], [1], [0, 0, 1, 1], [], []>} : vector<8x40xf32>, vector<40x128xf32>, vector<8x128xf32> -> vector<8x128xf32>
    %213 = vector.broadcast %21 : vector<8x1xf32> to vector<8x128xf32>
    %214 = arith.addf %212, %213 : vector<8x128xf32>
    %215 = vector.broadcast %8 : vector<1x128xf32> to vector<8x128xf32>
    %216 = arith.mulf %214, %215 : vector<8x128xf32>
    %c16_i32_77 = arith.constant 16 : i32
    %217 = tpu.dynamic_rotate %216 by %c16_i32_77 dim 1 : vector<8x128xf32>, i32 -> vector<8x128xf32>
    %218 = vector.shape_cast %4 : vector<1x128xi1> to vector<1x128xi1>
    %219 = vector.broadcast %218 : vector<1x128xi1> to vector<8x128xi1>
    %220 = arith.select %219, %216, %217 : vector<8x128xi1>, vector<8x128xf32>
    %c127_i32_78 = arith.constant 127 : i32
    %221 = tpu.dynamic_rotate %220 by %c127_i32_78 dim 1 : vector<8x128xf32>, i32 -> vector<8x128xf32>
    %c126_i32_79 = arith.constant 126 : i32
    %222 = tpu.dynamic_rotate %220 by %c126_i32_79 dim 1 : vector<8x128xf32>, i32 -> vector<8x128xf32>
    %c125_i32_80 = arith.constant 125 : i32
    %223 = tpu.dynamic_rotate %220 by %c125_i32_80 dim 1 : vector<8x128xf32>, i32 -> vector<8x128xf32>
    %c124_i32_81 = arith.constant 124 : i32
    %224 = tpu.dynamic_rotate %220 by %c124_i32_81 dim 1 : vector<8x128xf32>, i32 -> vector<8x128xf32>
    %225 = arith.addf %221, %223 : vector<8x128xf32>
    %226 = arith.addf %222, %224 : vector<8x128xf32>
    %227 = arith.subf %221, %223 : vector<8x128xf32>
    %228 = math.absf %227 : vector<8x128xf32>
    %229 = arith.subf %222, %224 : vector<8x128xf32>
    %230 = math.absf %229 : vector<8x128xf32>
    %231 = tpu.concatenate %216, %225, %226, %228, %230 in 0 : vector<8x128xf32>, vector<8x128xf32>, vector<8x128xf32>, vector<8x128xf32>, vector<8x128xf32> -> vector<40x128xf32>
    %cst_82 = arith.constant dense<0.000000e+00> : vector<8x128xf32>
    %232 = tpu.matmul %22, %231, %cst_82 {dimension_numbers = #tpu.dot_dimension_numbers<[1], [0], [0], [1], [0, 0, 1, 1], [], []>} : vector<8x40xf32>, vector<40x128xf32>, vector<8x128xf32> -> vector<8x128xf32>
    %233 = vector.broadcast %23 : vector<8x1xf32> to vector<8x128xf32>
    %234 = arith.addf %232, %233 : vector<8x128xf32>
    %235 = vector.broadcast %8 : vector<1x128xf32> to vector<8x128xf32>
    %236 = arith.mulf %234, %235 : vector<8x128xf32>
    %cst_83 = arith.constant dense<0.000000e+00> : vector<8xf32>
    %237 = vector.multi_reduction <add>, %236, %cst_83 [1] : vector<8x128xf32> to vector<8xf32>
    %238 = vector.shape_cast %237 : vector<8xf32> to vector<8x1xf32>
    %239 = arith.mulf %236, %236 : vector<8x128xf32>
    %cst_84 = arith.constant dense<0.000000e+00> : vector<8xf32>
    %240 = vector.multi_reduction <add>, %239, %cst_84 [1] : vector<8x128xf32> to vector<8xf32>
    %241 = vector.shape_cast %240 : vector<8xf32> to vector<8x1xf32>
    %cst_85 = arith.constant 6.250000e-02 : f32
    %242 = vector.broadcast %cst_85 : f32 to vector<8x1xf32>
    %243 = arith.mulf %238, %242 : vector<8x1xf32>
    %cst_86 = arith.constant 6.250000e-02 : f32
    %244 = vector.broadcast %cst_86 : f32 to vector<8x1xf32>
    %245 = arith.mulf %241, %244 : vector<8x1xf32>
    %246 = arith.mulf %243, %243 : vector<8x1xf32>
    %247 = arith.subf %245, %246 : vector<8x1xf32>
    %cst_87 = arith.constant 0.000000e+00 : f32
    %248 = vector.broadcast %cst_87 : f32 to vector<8x1xf32>
    %249 = arith.maximumf %247, %248 : vector<8x1xf32>
    %250 = vector.broadcast %243 : vector<8x1xf32> to vector<8x128xf32>
    %251 = arith.subf %236, %250 : vector<8x128xf32>
    %252 = vector.broadcast %8 : vector<1x128xf32> to vector<8x128xf32>
    %253 = arith.mulf %251, %252 : vector<8x128xf32>
    %cst_88 = arith.constant 9.99999974E-6 : f32
    %254 = vector.broadcast %cst_88 : f32 to vector<8x1xf32>
    %255 = arith.addf %249, %254 : vector<8x1xf32>
    %256 = math.rsqrt %255 : vector<8x1xf32>
    %257 = vector.broadcast %256 : vector<8x1xf32> to vector<8x128xf32>
    %258 = arith.mulf %253, %257 : vector<8x128xf32>
    %cst_89 = arith.constant 0.000000e+00 : f32
    %259 = vector.broadcast %cst_89 : f32 to vector<8x128xf32>
    %260 = arith.maximumf %258, %259 : vector<8x128xf32>
    %c0_90 = arith.constant 0 : index
    %c0_91 = arith.constant 0 : index
    %c0_92 = arith.constant 0 : index
    %261 = vector.load %arg3[%c0_90, %c0_91, %c0_92] : memref<2x8x128xf32, #tpu.memory_space<vmem>>, vector<1x8x128xf32>
    %262 = vector.shape_cast %261 : vector<1x8x128xf32> to vector<8x128xf32>
    %263 = vector.shape_cast %260 : vector<8x128xf32> to vector<1x8x128xf32>
    tpu.vector_store %arg3[%c0_90, %c0_91, %c0_92], %263 {strides = array<i32>} : memref<2x8x128xf32, #tpu.memory_space<vmem>>, vector<1x8x128xf32>,
    %c1 = arith.constant 1 : index
    %c0_93 = arith.constant 0 : index
    %c0_94 = arith.constant 0 : index
    %264 = vector.load %arg1[%c1, %c0_93, %c0_94] : memref<2x8x128xf32, #tpu.memory_space<vmem>>, vector<1x8x128xf32>
    %265 = vector.shape_cast %264 : vector<1x8x128xf32> to vector<8x128xf32>
    %c16_i32_95 = arith.constant 16 : i32
    %266 = tpu.dynamic_rotate %265 by %c16_i32_95 dim 1 : vector<8x128xf32>, i32 -> vector<8x128xf32>
    %267 = vector.shape_cast %4 : vector<1x128xi1> to vector<1x128xi1>
    %268 = vector.broadcast %267 : vector<1x128xi1> to vector<8x128xi1>
    %269 = arith.select %268, %265, %266 : vector<8x128xi1>, vector<8x128xf32>
    %c127_i32_96 = arith.constant 127 : i32
    %270 = tpu.dynamic_rotate %269 by %c127_i32_96 dim 1 : vector<8x128xf32>, i32 -> vector<8x128xf32>
    %c126_i32_97 = arith.constant 126 : i32
    %271 = tpu.dynamic_rotate %269 by %c126_i32_97 dim 1 : vector<8x128xf32>, i32 -> vector<8x128xf32>
    %c125_i32_98 = arith.constant 125 : i32
    %272 = tpu.dynamic_rotate %269 by %c125_i32_98 dim 1 : vector<8x128xf32>, i32 -> vector<8x128xf32>
    %c124_i32_99 = arith.constant 124 : i32
    %273 = tpu.dynamic_rotate %269 by %c124_i32_99 dim 1 : vector<8x128xf32>, i32 -> vector<8x128xf32>
    %274 = arith.addf %270, %272 : vector<8x128xf32>
    %275 = arith.addf %271, %273 : vector<8x128xf32>
    %276 = arith.subf %270, %272 : vector<8x128xf32>
    %277 = math.absf %276 : vector<8x128xf32>
    %278 = arith.subf %271, %273 : vector<8x128xf32>
    %279 = math.absf %278 : vector<8x128xf32>
    %280 = tpu.concatenate %265, %274, %275, %277, %279 in 0 : vector<8x128xf32>, vector<8x128xf32>, vector<8x128xf32>, vector<8x128xf32>, vector<8x128xf32> -> vector<40x128xf32>
    %cst_100 = arith.constant dense<0.000000e+00> : vector<8x128xf32>
    %281 = tpu.matmul %11, %280, %cst_100 {dimension_numbers = #tpu.dot_dimension_numbers<[1], [0], [0], [1], [0, 0, 1, 1], [], []>} : vector<8x40xf32>, vector<40x128xf32>, vector<8x128xf32> -> vector<8x128xf32>
    %282 = vector.broadcast %12 : vector<8x1xf32> to vector<8x128xf32>
    %283 = arith.addf %281, %282 : vector<8x128xf32>
    %284 = vector.broadcast %8 : vector<1x128xf32> to vector<8x128xf32>
    %285 = arith.mulf %283, %284 : vector<8x128xf32>
    %cst_101 = arith.constant dense<0.000000e+00> : vector<8xf32>
    %286 = vector.multi_reduction <add>, %285, %cst_101 [1] : vector<8x128xf32> to vector<8xf32>
    %287 = vector.shape_cast %286 : vector<8xf32> to vector<8x1xf32>
    %288 = arith.mulf %285, %285 : vector<8x128xf32>
    %cst_102 = arith.constant dense<0.000000e+00> : vector<8xf32>
    %289 = vector.multi_reduction <add>, %288, %cst_102 [1] : vector<8x128xf32> to vector<8xf32>
    %290 = vector.shape_cast %289 : vector<8xf32> to vector<8x1xf32>
    %cst_103 = arith.constant 6.250000e-02 : f32
    %291 = vector.broadcast %cst_103 : f32 to vector<8x1xf32>
    %292 = arith.mulf %287, %291 : vector<8x1xf32>
    %cst_104 = arith.constant 6.250000e-02 : f32
    %293 = vector.broadcast %cst_104 : f32 to vector<8x1xf32>
    %294 = arith.mulf %290, %293 : vector<8x1xf32>
    %295 = arith.mulf %292, %292 : vector<8x1xf32>
    %296 = arith.subf %294, %295 : vector<8x1xf32>
    %cst_105 = arith.constant 0.000000e+00 : f32
    %297 = vector.broadcast %cst_105 : f32 to vector<8x1xf32>
    %298 = arith.maximumf %296, %297 : vector<8x1xf32>
    %299 = vector.broadcast %292 : vector<8x1xf32> to vector<8x128xf32>
    %300 = arith.subf %285, %299 : vector<8x128xf32>
    %301 = vector.broadcast %8 : vector<1x128xf32> to vector<8x128xf32>
    %302 = arith.mulf %300, %301 : vector<8x128xf32>
    %cst_106 = arith.constant 9.99999974E-6 : f32
    %303 = vector.broadcast %cst_106 : f32 to vector<8x1xf32>
    %304 = arith.addf %298, %303 : vector<8x1xf32>
    %305 = math.rsqrt %304 : vector<8x1xf32>
    %306 = vector.broadcast %305 : vector<8x1xf32> to vector<8x128xf32>
    %307 = arith.mulf %302, %306 : vector<8x128xf32>
    %cst_107 = arith.constant 0.000000e+00 : f32
    %308 = vector.broadcast %cst_107 : f32 to vector<8x128xf32>
    %309 = arith.maximumf %307, %308 : vector<8x128xf32>
    %cst_108 = arith.constant dense<0.000000e+00> : vector<8x128xf32>
    %310 = tpu.matmul %309, %9, %cst_108 {dimension_numbers = #tpu.dot_dimension_numbers<[1], [0], [0], [1], [0, 0, 1, 1], [], []>} : vector<8x128xf32>, vector<128x128xf32>, vector<8x128xf32> -> vector<8x128xf32>
    %c12_i32_109 = arith.constant 12 : i32
    %311 = tpu.dynamic_rotate %310 by %c12_i32_109 dim 1 : vector<8x128xf32>, i32 -> vector<8x128xf32>
    %312 = vector.shape_cast %2 : vector<1x128xi1> to vector<1x128xi1>
    %313 = vector.broadcast %312 : vector<1x128xi1> to vector<8x128xi1>
    %314 = arith.select %313, %310, %311 : vector<8x128xi1>, vector<8x128xf32>
    %c127_i32_110 = arith.constant 127 : i32
    %315 = tpu.dynamic_rotate %314 by %c127_i32_110 dim 1 : vector<8x128xf32>, i32 -> vector<8x128xf32>
    %c126_i32_111 = arith.constant 126 : i32
    %316 = tpu.dynamic_rotate %314 by %c126_i32_111 dim 1 : vector<8x128xf32>, i32 -> vector<8x128xf32>
    %c125_i32_112 = arith.constant 125 : i32
    %317 = tpu.dynamic_rotate %314 by %c125_i32_112 dim 1 : vector<8x128xf32>, i32 -> vector<8x128xf32>
    %c124_i32_113 = arith.constant 124 : i32
    %318 = tpu.dynamic_rotate %314 by %c124_i32_113 dim 1 : vector<8x128xf32>, i32 -> vector<8x128xf32>
    %319 = arith.addf %315, %317 : vector<8x128xf32>
    %320 = arith.addf %316, %318 : vector<8x128xf32>
    %321 = arith.subf %315, %317 : vector<8x128xf32>
    %322 = math.absf %321 : vector<8x128xf32>
    %323 = arith.subf %316, %318 : vector<8x128xf32>
    %324 = math.absf %323 : vector<8x128xf32>
    %325 = tpu.concatenate %310, %319, %320, %322, %324 in 0 : vector<8x128xf32>, vector<8x128xf32>, vector<8x128xf32>, vector<8x128xf32>, vector<8x128xf32> -> vector<40x128xf32>
    %cst_114 = arith.constant dense<0.000000e+00> : vector<16x128xf32>
    %326 = tpu.matmul %13, %325, %cst_114 {dimension_numbers = #tpu.dot_dimension_numbers<[1], [0], [0], [1], [0, 0, 1, 1], [], []>} : vector<16x40xf32>, vector<40x128xf32>, vector<16x128xf32> -> vector<16x128xf32>
    %327 = vector.broadcast %14 : vector<16x1xf32> to vector<16x128xf32>
    %328 = arith.addf %326, %327 : vector<16x128xf32>
    %329 = vector.broadcast %6 : vector<1x128xf32> to vector<16x128xf32>
    %330 = arith.mulf %328, %329 : vector<16x128xf32>
    %cst_115 = arith.constant dense<0.000000e+00> : vector<16xf32>
    %331 = vector.multi_reduction <add>, %330, %cst_115 [1] : vector<16x128xf32> to vector<16xf32>
    %332 = vector.shape_cast %331 : vector<16xf32> to vector<16x1xf32>
    %333 = arith.mulf %330, %330 : vector<16x128xf32>
    %cst_116 = arith.constant dense<0.000000e+00> : vector<16xf32>
    %334 = vector.multi_reduction <add>, %333, %cst_116 [1] : vector<16x128xf32> to vector<16xf32>
    %335 = vector.shape_cast %334 : vector<16xf32> to vector<16x1xf32>
    %cst_117 = arith.constant 0.0833333358 : f32
    %336 = vector.broadcast %cst_117 : f32 to vector<16x1xf32>
    %337 = arith.mulf %332, %336 : vector<16x1xf32>
    %cst_118 = arith.constant 0.0833333358 : f32
    %338 = vector.broadcast %cst_118 : f32 to vector<16x1xf32>
    %339 = arith.mulf %335, %338 : vector<16x1xf32>
    %340 = arith.mulf %337, %337 : vector<16x1xf32>
    %341 = arith.subf %339, %340 : vector<16x1xf32>
    %cst_119 = arith.constant 0.000000e+00 : f32
    %342 = vector.broadcast %cst_119 : f32 to vector<16x1xf32>
    %343 = arith.maximumf %341, %342 : vector<16x1xf32>
    %344 = vector.broadcast %337 : vector<16x1xf32> to vector<16x128xf32>
    %345 = arith.subf %330, %344 : vector<16x128xf32>
    %346 = vector.broadcast %6 : vector<1x128xf32> to vector<16x128xf32>
    %347 = arith.mulf %345, %346 : vector<16x128xf32>
    %cst_120 = arith.constant 9.99999974E-6 : f32
    %348 = vector.broadcast %cst_120 : f32 to vector<16x1xf32>
    %349 = arith.addf %343, %348 : vector<16x1xf32>
    %350 = math.rsqrt %349 : vector<16x1xf32>
    %351 = vector.broadcast %350 : vector<16x1xf32> to vector<16x128xf32>
    %352 = arith.mulf %347, %351 : vector<16x128xf32>
    %cst_121 = arith.constant 0.000000e+00 : f32
    %353 = vector.broadcast %cst_121 : f32 to vector<16x128xf32>
    %354 = arith.maximumf %352, %353 : vector<16x128xf32>
    %c12_i32_122 = arith.constant 12 : i32
    %355 = tpu.dynamic_rotate %354 by %c12_i32_122 dim 1 : vector<16x128xf32>, i32 -> vector<16x128xf32>
    %356 = vector.shape_cast %2 : vector<1x128xi1> to vector<1x128xi1>
    %357 = vector.broadcast %356 : vector<1x128xi1> to vector<16x128xi1>
    %358 = arith.select %357, %354, %355 : vector<16x128xi1>, vector<16x128xf32>
    %c127_i32_123 = arith.constant 127 : i32
    %359 = tpu.dynamic_rotate %358 by %c127_i32_123 dim 1 : vector<16x128xf32>, i32 -> vector<16x128xf32>
    %c126_i32_124 = arith.constant 126 : i32
    %360 = tpu.dynamic_rotate %358 by %c126_i32_124 dim 1 : vector<16x128xf32>, i32 -> vector<16x128xf32>
    %c125_i32_125 = arith.constant 125 : i32
    %361 = tpu.dynamic_rotate %358 by %c125_i32_125 dim 1 : vector<16x128xf32>, i32 -> vector<16x128xf32>
    %c124_i32_126 = arith.constant 124 : i32
    %362 = tpu.dynamic_rotate %358 by %c124_i32_126 dim 1 : vector<16x128xf32>, i32 -> vector<16x128xf32>
    %363 = arith.addf %359, %361 : vector<16x128xf32>
    %364 = arith.addf %360, %362 : vector<16x128xf32>
    %365 = arith.subf %359, %361 : vector<16x128xf32>
    %366 = math.absf %365 : vector<16x128xf32>
    %367 = arith.subf %360, %362 : vector<16x128xf32>
    %368 = math.absf %367 : vector<16x128xf32>
    %369 = tpu.concatenate %354, %363, %364, %366, %368 in 0 : vector<16x128xf32>, vector<16x128xf32>, vector<16x128xf32>, vector<16x128xf32>, vector<16x128xf32> -> vector<80x128xf32>
    %cst_127 = arith.constant dense<0.000000e+00> : vector<8x128xf32>
    %370 = tpu.matmul %15, %369, %cst_127 {dimension_numbers = #tpu.dot_dimension_numbers<[1], [0], [0], [1], [0, 0, 1, 1], [], []>} : vector<8x80xf32>, vector<80x128xf32>, vector<8x128xf32> -> vector<8x128xf32>
    %371 = vector.broadcast %16 : vector<8x1xf32> to vector<8x128xf32>
    %372 = arith.addf %370, %371 : vector<8x128xf32>
    %373 = vector.broadcast %6 : vector<1x128xf32> to vector<8x128xf32>
    %374 = arith.mulf %372, %373 : vector<8x128xf32>
    %cst_128 = arith.constant dense<0.000000e+00> : vector<8x128xf32>
    %375 = tpu.matmul %374, %10, %cst_128 {dimension_numbers = #tpu.dot_dimension_numbers<[1], [0], [0], [1], [0, 0, 1, 1], [], []>} : vector<8x128xf32>, vector<128x128xf32>, vector<8x128xf32> -> vector<8x128xf32>
    %c16_i32_129 = arith.constant 16 : i32
    %376 = tpu.dynamic_rotate %375 by %c16_i32_129 dim 1 : vector<8x128xf32>, i32 -> vector<8x128xf32>
    %377 = vector.shape_cast %4 : vector<1x128xi1> to vector<1x128xi1>
    %378 = vector.broadcast %377 : vector<1x128xi1> to vector<8x128xi1>
    %379 = arith.select %378, %375, %376 : vector<8x128xi1>, vector<8x128xf32>
    %c127_i32_130 = arith.constant 127 : i32
    %380 = tpu.dynamic_rotate %379 by %c127_i32_130 dim 1 : vector<8x128xf32>, i32 -> vector<8x128xf32>
    %c126_i32_131 = arith.constant 126 : i32
    %381 = tpu.dynamic_rotate %379 by %c126_i32_131 dim 1 : vector<8x128xf32>, i32 -> vector<8x128xf32>
    %c125_i32_132 = arith.constant 125 : i32
    %382 = tpu.dynamic_rotate %379 by %c125_i32_132 dim 1 : vector<8x128xf32>, i32 -> vector<8x128xf32>
    %c124_i32_133 = arith.constant 124 : i32
    %383 = tpu.dynamic_rotate %379 by %c124_i32_133 dim 1 : vector<8x128xf32>, i32 -> vector<8x128xf32>
    %384 = arith.addf %380, %382 : vector<8x128xf32>
    %385 = arith.addf %381, %383 : vector<8x128xf32>
    %386 = arith.subf %380, %382 : vector<8x128xf32>
    %387 = math.absf %386 : vector<8x128xf32>
    %388 = arith.subf %381, %383 : vector<8x128xf32>
    %389 = math.absf %388 : vector<8x128xf32>
    %390 = tpu.concatenate %375, %384, %385, %387, %389 in 0 : vector<8x128xf32>, vector<8x128xf32>, vector<8x128xf32>, vector<8x128xf32>, vector<8x128xf32> -> vector<40x128xf32>
    %cst_134 = arith.constant dense<0.000000e+00> : vector<8x128xf32>
    %391 = tpu.matmul %17, %390, %cst_134 {dimension_numbers = #tpu.dot_dimension_numbers<[1], [0], [0], [1], [0, 0, 1, 1], [], []>} : vector<8x40xf32>, vector<40x128xf32>, vector<8x128xf32> -> vector<8x128xf32>
    %c16_i32_135 = arith.constant 16 : i32
    %392 = tpu.dynamic_rotate %309 by %c16_i32_135 dim 1 : vector<8x128xf32>, i32 -> vector<8x128xf32>
    %393 = vector.shape_cast %4 : vector<1x128xi1> to vector<1x128xi1>
    %394 = vector.broadcast %393 : vector<1x128xi1> to vector<8x128xi1>
    %395 = arith.select %394, %309, %392 : vector<8x128xi1>, vector<8x128xf32>
    %c127_i32_136 = arith.constant 127 : i32
    %396 = tpu.dynamic_rotate %395 by %c127_i32_136 dim 1 : vector<8x128xf32>, i32 -> vector<8x128xf32>
    %c126_i32_137 = arith.constant 126 : i32
    %397 = tpu.dynamic_rotate %395 by %c126_i32_137 dim 1 : vector<8x128xf32>, i32 -> vector<8x128xf32>
    %c125_i32_138 = arith.constant 125 : i32
    %398 = tpu.dynamic_rotate %395 by %c125_i32_138 dim 1 : vector<8x128xf32>, i32 -> vector<8x128xf32>
    %c124_i32_139 = arith.constant 124 : i32
    %399 = tpu.dynamic_rotate %395 by %c124_i32_139 dim 1 : vector<8x128xf32>, i32 -> vector<8x128xf32>
    %400 = arith.addf %396, %398 : vector<8x128xf32>
    %401 = arith.addf %397, %399 : vector<8x128xf32>
    %402 = arith.subf %396, %398 : vector<8x128xf32>
    %403 = math.absf %402 : vector<8x128xf32>
    %404 = arith.subf %397, %399 : vector<8x128xf32>
    %405 = math.absf %404 : vector<8x128xf32>
    %406 = tpu.concatenate %309, %400, %401, %403, %405 in 0 : vector<8x128xf32>, vector<8x128xf32>, vector<8x128xf32>, vector<8x128xf32>, vector<8x128xf32> -> vector<40x128xf32>
    %cst_140 = arith.constant dense<0.000000e+00> : vector<8x128xf32>
    %407 = tpu.matmul %18, %406, %cst_140 {dimension_numbers = #tpu.dot_dimension_numbers<[1], [0], [0], [1], [0, 0, 1, 1], [], []>} : vector<8x40xf32>, vector<40x128xf32>, vector<8x128xf32> -> vector<8x128xf32>
    %408 = arith.addf %391, %407 : vector<8x128xf32>
    %409 = vector.broadcast %19 : vector<8x1xf32> to vector<8x128xf32>
    %410 = arith.addf %408, %409 : vector<8x128xf32>
    %411 = vector.broadcast %8 : vector<1x128xf32> to vector<8x128xf32>
    %412 = arith.mulf %410, %411 : vector<8x128xf32>
    %cst_141 = arith.constant dense<0.000000e+00> : vector<8xf32>
    %413 = vector.multi_reduction <add>, %412, %cst_141 [1] : vector<8x128xf32> to vector<8xf32>
    %414 = vector.shape_cast %413 : vector<8xf32> to vector<8x1xf32>
    %415 = arith.mulf %412, %412 : vector<8x128xf32>
    %cst_142 = arith.constant dense<0.000000e+00> : vector<8xf32>
    %416 = vector.multi_reduction <add>, %415, %cst_142 [1] : vector<8x128xf32> to vector<8xf32>
    %417 = vector.shape_cast %416 : vector<8xf32> to vector<8x1xf32>
    %cst_143 = arith.constant 6.250000e-02 : f32
    %418 = vector.broadcast %cst_143 : f32 to vector<8x1xf32>
    %419 = arith.mulf %414, %418 : vector<8x1xf32>
    %cst_144 = arith.constant 6.250000e-02 : f32
    %420 = vector.broadcast %cst_144 : f32 to vector<8x1xf32>
    %421 = arith.mulf %417, %420 : vector<8x1xf32>
    %422 = arith.mulf %419, %419 : vector<8x1xf32>
    %423 = arith.subf %421, %422 : vector<8x1xf32>
    %cst_145 = arith.constant 0.000000e+00 : f32
    %424 = vector.broadcast %cst_145 : f32 to vector<8x1xf32>
    %425 = arith.maximumf %423, %424 : vector<8x1xf32>
    %426 = vector.broadcast %419 : vector<8x1xf32> to vector<8x128xf32>
    %427 = arith.subf %412, %426 : vector<8x128xf32>
    %428 = vector.broadcast %8 : vector<1x128xf32> to vector<8x128xf32>
    %429 = arith.mulf %427, %428 : vector<8x128xf32>
    %cst_146 = arith.constant 9.99999974E-6 : f32
    %430 = vector.broadcast %cst_146 : f32 to vector<8x1xf32>
    %431 = arith.addf %425, %430 : vector<8x1xf32>
    %432 = math.rsqrt %431 : vector<8x1xf32>
    %433 = vector.broadcast %432 : vector<8x1xf32> to vector<8x128xf32>
    %434 = arith.mulf %429, %433 : vector<8x128xf32>
    %cst_147 = arith.constant 0.000000e+00 : f32
    %435 = vector.broadcast %cst_147 : f32 to vector<8x128xf32>
    %436 = arith.maximumf %434, %435 : vector<8x128xf32>
    %c16_i32_148 = arith.constant 16 : i32
    %437 = tpu.dynamic_rotate %436 by %c16_i32_148 dim 1 : vector<8x128xf32>, i32 -> vector<8x128xf32>
    %438 = vector.shape_cast %4 : vector<1x128xi1> to vector<1x128xi1>
    %439 = vector.broadcast %438 : vector<1x128xi1> to vector<8x128xi1>
    %440 = arith.select %439, %436, %437 : vector<8x128xi1>, vector<8x128xf32>
    %c127_i32_149 = arith.constant 127 : i32
    %441 = tpu.dynamic_rotate %440 by %c127_i32_149 dim 1 : vector<8x128xf32>, i32 -> vector<8x128xf32>
    %c126_i32_150 = arith.constant 126 : i32
    %442 = tpu.dynamic_rotate %440 by %c126_i32_150 dim 1 : vector<8x128xf32>, i32 -> vector<8x128xf32>
    %c125_i32_151 = arith.constant 125 : i32
    %443 = tpu.dynamic_rotate %440 by %c125_i32_151 dim 1 : vector<8x128xf32>, i32 -> vector<8x128xf32>
    %c124_i32_152 = arith.constant 124 : i32
    %444 = tpu.dynamic_rotate %440 by %c124_i32_152 dim 1 : vector<8x128xf32>, i32 -> vector<8x128xf32>
    %445 = arith.addf %441, %443 : vector<8x128xf32>
    %446 = arith.addf %442, %444 : vector<8x128xf32>
    %447 = arith.subf %441, %443 : vector<8x128xf32>
    %448 = math.absf %447 : vector<8x128xf32>
    %449 = arith.subf %442, %444 : vector<8x128xf32>
    %450 = math.absf %449 : vector<8x128xf32>
    %451 = tpu.concatenate %436, %445, %446, %448, %450 in 0 : vector<8x128xf32>, vector<8x128xf32>, vector<8x128xf32>, vector<8x128xf32>, vector<8x128xf32> -> vector<40x128xf32>
    %cst_153 = arith.constant dense<0.000000e+00> : vector<8x128xf32>
    %452 = tpu.matmul %20, %451, %cst_153 {dimension_numbers = #tpu.dot_dimension_numbers<[1], [0], [0], [1], [0, 0, 1, 1], [], []>} : vector<8x40xf32>, vector<40x128xf32>, vector<8x128xf32> -> vector<8x128xf32>
    %453 = vector.broadcast %21 : vector<8x1xf32> to vector<8x128xf32>
    %454 = arith.addf %452, %453 : vector<8x128xf32>
    %455 = vector.broadcast %8 : vector<1x128xf32> to vector<8x128xf32>
    %456 = arith.mulf %454, %455 : vector<8x128xf32>
    %c16_i32_154 = arith.constant 16 : i32
    %457 = tpu.dynamic_rotate %456 by %c16_i32_154 dim 1 : vector<8x128xf32>, i32 -> vector<8x128xf32>
    %458 = vector.shape_cast %4 : vector<1x128xi1> to vector<1x128xi1>
    %459 = vector.broadcast %458 : vector<1x128xi1> to vector<8x128xi1>
    %460 = arith.select %459, %456, %457 : vector<8x128xi1>, vector<8x128xf32>
    %c127_i32_155 = arith.constant 127 : i32
    %461 = tpu.dynamic_rotate %460 by %c127_i32_155 dim 1 : vector<8x128xf32>, i32 -> vector<8x128xf32>
    %c126_i32_156 = arith.constant 126 : i32
    %462 = tpu.dynamic_rotate %460 by %c126_i32_156 dim 1 : vector<8x128xf32>, i32 -> vector<8x128xf32>
    %c125_i32_157 = arith.constant 125 : i32
    %463 = tpu.dynamic_rotate %460 by %c125_i32_157 dim 1 : vector<8x128xf32>, i32 -> vector<8x128xf32>
    %c124_i32_158 = arith.constant 124 : i32
    %464 = tpu.dynamic_rotate %460 by %c124_i32_158 dim 1 : vector<8x128xf32>, i32 -> vector<8x128xf32>
    %465 = arith.addf %461, %463 : vector<8x128xf32>
    %466 = arith.addf %462, %464 : vector<8x128xf32>
    %467 = arith.subf %461, %463 : vector<8x128xf32>
    %468 = math.absf %467 : vector<8x128xf32>
    %469 = arith.subf %462, %464 : vector<8x128xf32>
    %470 = math.absf %469 : vector<8x128xf32>
    %471 = tpu.concatenate %456, %465, %466, %468, %470 in 0 : vector<8x128xf32>, vector<8x128xf32>, vector<8x128xf32>, vector<8x128xf32>, vector<8x128xf32> -> vector<40x128xf32>
    %cst_159 = arith.constant dense<0.000000e+00> : vector<8x128xf32>
    %472 = tpu.matmul %22, %471, %cst_159 {dimension_numbers = #tpu.dot_dimension_numbers<[1], [0], [0], [1], [0, 0, 1, 1], [], []>} : vector<8x40xf32>, vector<40x128xf32>, vector<8x128xf32> -> vector<8x128xf32>
    %473 = vector.broadcast %23 : vector<8x1xf32> to vector<8x128xf32>
    %474 = arith.addf %472, %473 : vector<8x128xf32>
    %475 = vector.broadcast %8 : vector<1x128xf32> to vector<8x128xf32>
    %476 = arith.mulf %474, %475 : vector<8x128xf32>
    %cst_160 = arith.constant dense<0.000000e+00> : vector<8xf32>
    %477 = vector.multi_reduction <add>, %476, %cst_160 [1] : vector<8x128xf32> to vector<8xf32>
    %478 = vector.shape_cast %477 : vector<8xf32> to vector<8x1xf32>
    %479 = arith.mulf %476, %476 : vector<8x128xf32>
    %cst_161 = arith.constant dense<0.000000e+00> : vector<8xf32>
    %480 = vector.multi_reduction <add>, %479, %cst_161 [1] : vector<8x128xf32> to vector<8xf32>
    %481 = vector.shape_cast %480 : vector<8xf32> to vector<8x1xf32>
    %cst_162 = arith.constant 6.250000e-02 : f32
    %482 = vector.broadcast %cst_162 : f32 to vector<8x1xf32>
    %483 = arith.mulf %478, %482 : vector<8x1xf32>
    %cst_163 = arith.constant 6.250000e-02 : f32
    %484 = vector.broadcast %cst_163 : f32 to vector<8x1xf32>
    %485 = arith.mulf %481, %484 : vector<8x1xf32>
    %486 = arith.mulf %483, %483 : vector<8x1xf32>
    %487 = arith.subf %485, %486 : vector<8x1xf32>
    %cst_164 = arith.constant 0.000000e+00 : f32
    %488 = vector.broadcast %cst_164 : f32 to vector<8x1xf32>
    %489 = arith.maximumf %487, %488 : vector<8x1xf32>
    %490 = vector.broadcast %483 : vector<8x1xf32> to vector<8x128xf32>
    %491 = arith.subf %476, %490 : vector<8x128xf32>
    %492 = vector.broadcast %8 : vector<1x128xf32> to vector<8x128xf32>
    %493 = arith.mulf %491, %492 : vector<8x128xf32>
    %cst_165 = arith.constant 9.99999974E-6 : f32
    %494 = vector.broadcast %cst_165 : f32 to vector<8x1xf32>
    %495 = arith.addf %489, %494 : vector<8x1xf32>
    %496 = math.rsqrt %495 : vector<8x1xf32>
    %497 = vector.broadcast %496 : vector<8x1xf32> to vector<8x128xf32>
    %498 = arith.mulf %493, %497 : vector<8x128xf32>
    %cst_166 = arith.constant 0.000000e+00 : f32
    %499 = vector.broadcast %cst_166 : f32 to vector<8x128xf32>
    %500 = arith.maximumf %498, %499 : vector<8x128xf32>
    %c1_167 = arith.constant 1 : index
    %c0_168 = arith.constant 0 : index
    %c0_169 = arith.constant 0 : index
    %501 = vector.load %arg3[%c1_167, %c0_168, %c0_169] : memref<2x8x128xf32, #tpu.memory_space<vmem>>, vector<1x8x128xf32>
    %502 = vector.shape_cast %501 : vector<1x8x128xf32> to vector<8x128xf32>
    %503 = vector.shape_cast %500 : vector<8x128xf32> to vector<1x8x128xf32>
    tpu.vector_store %arg3[%c1_167, %c0_168, %c0_169], %503 {strides = array<i32>} : memref<2x8x128xf32, #tpu.memory_space<vmem>>, vector<1x8x128xf32>,
    return
  }
  func.func @transform_0(%arg0: i32) -> (i32, i32, i32) {
    %c0_i32 = arith.constant 0 : i32
    %c0_i32_0 = arith.constant 0 : i32
    %c0_i32_1 = arith.constant 0 : i32
    %c0_i32_2 = arith.constant 0 : i32
    return %c0_i32, %c0_i32_0, %c0_i32_1 : i32, i32, i32
  }
  func.func @transform_1(%arg0: i32) -> (i32, i32) {
    %c0_i32 = arith.constant 0 : i32
    %c0_i32_0 = arith.constant 0 : i32
    %c0_i32_1 = arith.constant 0 : i32
    return %c0_i32, %c0_i32_0 : i32, i32
  }
  func.func @transform_2(%arg0: i32) -> (i32, i32, i32) {
    %c0_i32 = arith.constant 0 : i32
    %c0_i32_0 = arith.constant 0 : i32
    %c0_i32_1 = arith.constant 0 : i32
    %c0_i32_2 = arith.constant 0 : i32
    return %c0_i32, %c0_i32_0, %c0_i32_1 : i32, i32, i32
  }
}

</mosaic_0001>

<llo_original>
// kernel: mesh_encoder_decoder.1
$region0: #{mesh_encoder_decoder.1}
  #allocation0 [shape = 'u32[]', space=smem, size = 0x4, offset = 0x4, fixed_abs, tag = 'smem constant byte address 0x4 - core index']
  #allocation1 [shape = 'u32[72,128]{1,0:T(1,128)}', space=vmem, size = 0x9000, scoped, tag = 'internal scratch']
  %s0 = inlined_call_operand.hbm [shape: f32[2,8,128], index: 0, kind: input, shape index: {}]
  %s1 = inlined_call_operand.hbm [shape: f32[312,128], index: 1, kind: input, shape index: {}]
  %s2 = inlined_call_operand.vmem [shape: f32[2,8,128], index: 2, kind: output, shape index: {}]
  %s3 = sld [smem:[#allocation0]]
  $region26: #{mesh_encoder_decoder.1} parent=0
    _
  %s5 = ssub.s32 1, %s3
  %s6 = scalar_select 0, %s5, %s3
  $region1: #{mesh_encoder_decoder.1} parent=0
    #allocation2 [shape = 'u8[8192]{0}', space=vmem, size = 0x2000, scoped, tag = 'input window, operand 0, single buffered']
    #allocation3 [shape = 's32[1]{0}', space=sflag, size = 0x4, scoped, tag = 'scoped memory for mesh_encoder_decoder.1']
    #allocation4 [shape = 'u8[159744]{0}', space=vmem, size = 0x27000, scoped, tag = 'input window, operand 1, single buffered']
    #allocation5 [shape = 's32[1]{0}', space=sflag, size = 0x4, scoped, tag = 'scoped memory for mesh_encoder_decoder.1']
    %7 = vsyncpa [#allocation3], 0
    %8 = vsyncpa [#allocation5], 0
    // Predicated region
    $region2: #{mesh_encoder_decoder.1} parent=1 // pred_check
      _
    $region3: #{mesh_encoder_decoder.1} parent=1 // pred_check_branch
      %10 = sbr.rel (0) target = $region5
    $region4: #{mesh_encoder_decoder.1} parent=1 // pred_region
      %12 = vsyncadd [#allocation3], 0
      %s13 = sshll.u32 %s0, 4
      %s14 = int_to_ptr.hbm [resolvable:$true] %s13
      %s15 = sshll.u32 [#allocation2], 4
      %s16 = int_to_ptr.vmem [resolvable:$true] %s15
      %21 = dma.hbm_to_vmem [thread:$0]  %s14, 256, %s16, [#allocation3], 128, 128, 8
    $region5: #{mesh_encoder_decoder.1} parent=1 // pred_fallthru
      _
    // Predicated region
    $region6: #{mesh_encoder_decoder.1} parent=1 // pred_check
      _
    $region7: #{mesh_encoder_decoder.1} parent=1 // pred_check_branch
      %23 = sbr.rel (0) target = $region9
    $region8: #{mesh_encoder_decoder.1} parent=1 // pred_region
      %25 = vsyncadd [#allocation5], 0
      %s26 = sshll.u32 %s1, 4
      %s27 = int_to_ptr.hbm [resolvable:$true] %s26
      %s28 = sshll.u32 [#allocation4], 4
      %s29 = int_to_ptr.vmem [resolvable:$true] %s28
      %34 = dma.hbm_to_vmem [thread:$0]  %s27, 4992, %s29, [#allocation5], 128, 128, 8
    $region9: #{mesh_encoder_decoder.1} parent=1 // pred_fallthru
      _
    // Predicated region
    $region10: #{mesh_encoder_decoder.1} parent=1 // pred_check
      _
    $region11: #{mesh_encoder_decoder.1} parent=1 // pred_check_branch
      %36 = sbr.rel (0) target = $region13
    $region12: #{mesh_encoder_decoder.1} parent=1 // pred_region
      %38 = dma.done [#allocation3], 256
    $region13: #{mesh_encoder_decoder.1} parent=1 // pred_fallthru
      _
    // Predicated region
    $region14: #{mesh_encoder_decoder.1} parent=1 // pred_check
      _
    $region15: #{mesh_encoder_decoder.1} parent=1 // pred_check_branch
      %40 = sbr.rel (0) target = $region17
    $region16: #{mesh_encoder_decoder.1} parent=1 // pred_region
      %42 = dma.done [#allocation5], 4992
    $region17: #{mesh_encoder_decoder.1} parent=1 // pred_fallthru
      _
    %v43 = vlaneseq
    %v44 = vand.u32 %v43, 127
    %vm45 = vcmp.lt.s32.totalorder %v44, 12
    %vm46 = vcmp.lt.s32.totalorder %v44, 16
    %v47 = vsel %vm45, 1, 0
    %v48 = vcvt.s32.f32 %v47
    %v49 = vsel %vm46, 1, 0
    %v50 = vcvt.s32.f32 %v49
    %v51 = vld [vmem:[#allocation4] sm:$0xff]
    %v52 = vld [vmem:[#allocation4 + $0x8] sm:$0xff]
    %v53 = vld [vmem:[#allocation4 + $0x10] sm:$0xff]
    %v54 = vld [vmem:[#allocation4 + $0x18] sm:$0xff]
    %v55 = vld [vmem:[#allocation4 + $0x20] sm:$0xff]
    %v56 = vld [vmem:[#allocation4 + $0x28] sm:$0xff]
    %v57 = vld [vmem:[#allocation4 + $0x30] sm:$0xff]
    %v58 = vld [vmem:[#allocation4 + $0x38] sm:$0xff]
    %v59 = vld [vmem:[#allocation4 + $0x40] sm:$0xff]
    %v60 = vld [vmem:[#allocation4 + $0x48] sm:$0xff]
    %v61 = vld [vmem:[#allocation4 + $0x50] sm:$0xff]
    %v62 = vld [vmem:[#allocation4 + $0x58] sm:$0xff]
    %v63 = vld [vmem:[#allocation4 + $0x60] sm:$0xff]
    %v64 = vld [vmem:[#allocation4 + $0x68] sm:$0xff]
    %v65 = vld [vmem:[#allocation4 + $0x70] sm:$0xff]
    %v66 = vld [vmem:[#allocation4 + $0x78] sm:$0xff]
    %v67 = vld [vmem:[#allocation4 + $0x80] sm:$0xff]
    %v68 = vld [vmem:[#allocation4 + $0x88] sm:$0xff]
    %v69 = vld [vmem:[#allocation4 + $0x90] sm:$0xff]
    %v70 = vld [vmem:[#allocation4 + $0x98] sm:$0xff]
    %v71 = vld [vmem:[#allocation4 + $0xa0] sm:$0xff]
    %v72 = vld [vmem:[#allocation4 + $0xa8] sm:$0xff]
    %v73 = vld [vmem:[#allocation4 + $0xb0] sm:$0xff]
    %v74 = vld [vmem:[#allocation4 + $0xb8] sm:$0xff]
    %v75 = vld [vmem:[#allocation4 + $0xc0] sm:$0xff]
    %v76 = vld [vmem:[#allocation4 + $0xc8] sm:$0xff]
    %v77 = vld [vmem:[#allocation4 + $0xd0] sm:$0xff]
    %v78 = vld [vmem:[#allocation4 + $0xd8] sm:$0xff]
    %v79 = vld [vmem:[#allocation4 + $0xe0] sm:$0xff]
    %v80 = vld [vmem:[#allocation4 + $0xe8] sm:$0xff]
    %v81 = vld [vmem:[#allocation4 + $0xf0] sm:$0xff]
    %v82 = vld [vmem:[#allocation4 + $0xf8] sm:$0xff]
    %v83 = vld [vmem:[#allocation4 + $0x100] sm:$0xff]
    %v84 = vld [vmem:[#allocation4 + $0x108] sm:$0xff]
    %v85 = vld [vmem:[#allocation4 + $0x110] sm:$0xff]
    %v86 = vld [vmem:[#allocation4 + $0x118] sm:$0xff]
    %v87 = vld [vmem:[#allocation4 + $0x120] sm:$0xff]
    %v88 = vld [vmem:[#allocation4 + $0x128] sm:$0xff]
    %v89 = vld [vmem:[#allocation4 + $0x130] sm:$0xff]
    %v90 = vld [vmem:[#allocation2] sm:$0xff]
    %91 = vrot.lane.b32.xlu0 %v90, 16
    %v92 = vpop.permute.xlu0 %91
    %vm93 = vcmp.eq.s32.totalorder %v49, 1
    %v94 = vsel %vm93, %v90, %v92
    %95 = vrot.lane.b32.xlu0 %v94, 127
    %v96 = vpop.permute.xlu0 %95
    %97 = vrot.lane.b32.xlu0 %v94, 126
    %v98 = vpop.permute.xlu0 %97
    %99 = vrot.lane.b32.xlu0 %v94, 125
    %v100 = vpop.permute.xlu0 %99
    %101 = vrot.lane.b32.xlu0 %v94, 124
    %v102 = vpop.permute.xlu0 %101
    %v103 = vadd.f32 %v96, %v100
    %v104 = vadd.f32 %v98, %v102
    %v105 = vsub.f32 %v96, %v100
    %v106 = vand.u32 2147483647, %v105
    %v107 = vsub.f32 %v98, %v102
    %v108 = vand.u32 2147483647, %v107
    %110 = vset.pattern.permute.xlu0 127
    %111 = vperm.xlu0 %110, %v83
    %v112 = vpop.permute.xlu0 %111
    %vm114 = vcmask 326656
    %v115 = vsel %vm114, %v83, 0
    %117 = vmatpush.msra.mxu0 0.0
    %118 = vmatpush.msra.mxu0 0.0
    %119 = vmatpush.msra.mxu0 0.0
    %120 = vmatpush.msra.mxu0 0.0
    %121 = vmatpush.msra.mxu0 0.0
    %122 = vmatpush.msra.mxu0 0.0
    %123 = vmatpush.msra.mxu0 0.0
    %124 = vmatpush.msra.mxu0 0.0
    %125 = vmatpush.msra.mxu0 0.0
    %126 = vmatpush.msra.mxu0 0.0
    %127 = vmatpush.msra.mxu0 0.0
    %128 = vmatpush.msra.mxu0 %v108
    %129 = vmatpush.msra.mxu0 %v106
    %130 = vmatpush.msra.mxu0 %v104
    %131 = vmatpush.msra.mxu0 %v103
    %132 = vmatpush.msra.mxu0 %v90
    %133 = vmatmul.f32.gmra.mxu0 %v115
    %v134 = vpop.f32.mrf.mxu0
    %v135 = vadd.f32 %v112, %v134
    %136 = vdwg.mxu0
    %v137 = vmul.f32 %v135, %v50
    %138 = vadd.xlane.f32.xlu0 %v137
    %v139 = vpop.xlane.xlu0 %138
    %v140 = vmul.f32 %v137, %v137
    %141 = vadd.xlane.f32.xlu0 %v140
    %v142 = vpop.xlane.xlu0 %141
    %v143 = vmul.f32 %v139, 0.0625
    %v144 = vmul.f32 %v142, 0.0625
    %v145 = vmul.f32 %v143, %v143
    %v146 = vsub.f32 %v144, %v145
    %v147 = vmax.f32 %v146, 0.0
    %v148 = vsub.f32 %v137, %v143
    %v149 = vmul.f32 %v148, %v50
    %v150 = vadd.f32 %v147, 1e-05
    %v151 = vrsqrt.pop %v150
    %v152 = vmul.f32 %v151, %v150
    %v153 = vmul.f32 %v152, %v151
    %v154 = vmul.f32 0.5, %v153
    %v155 = vsub.f32 1.5, %v154
    %v156 = vmul.f32 %v151, %v155
    %vm157 = vweird.f32 %v150
    %vm158 = vweird.f32 %v151
    %vm159 = vmor %vm157, %vm158
    %v160 = vsel %vm159, %v151, %v156
    %v161 = vmul.f32 %v149, %v160
    %v162 = vmax.f32 %v161, 0.0
    %163 = vmatpush.msra.mxu0 %v66
    %164 = vmatpush.msra.mxu0 %v65
    %165 = vmatpush.msra.mxu0 %v64
    %166 = vmatpush.msra.mxu0 %v63
    %167 = vmatpush.msra.mxu0 %v62
    %168 = vmatpush.msra.mxu0 %v61
    %169 = vmatpush.msra.mxu0 %v60
    %170 = vmatpush.msra.mxu0 %v59
    %171 = vmatpush.msra.mxu0 %v58
    %172 = vmatpush.msra.mxu0 %v57
    %173 = vmatpush.msra.mxu0 %v56
    %174 = vmatpush.msra.mxu0 %v55
    %175 = vmatpush.msra.mxu0 %v54
    %176 = vmatpush.msra.mxu0 %v53
    %177 = vmatpush.msra.mxu0 %v52
    %178 = vmatpush.msra.mxu0 %v51
    %179 = vmatmul.f32.gmra.mxu0 %v162
    %v180 = vpop.f32.mrf.mxu0
    %v181 = vadd.f32 0.0, %v180
    %182 = vdwg.mxu0
    %183 = vrot.lane.b32.xlu0 %v181, 12
    %v184 = vpop.permute.xlu0 %183
    %vm185 = vcmp.eq.s32.totalorder %v47, 1
    %v186 = vsel %vm185, %v181, %v184
    %187 = vrot.lane.b32.xlu0 %v186, 127
    %v188 = vpop.permute.xlu0 %187
    %189 = vrot.lane.b32.xlu0 %v186, 126
    %v190 = vpop.permute.xlu0 %189
    %191 = vrot.lane.b32.xlu0 %v186, 125
    %v192 = vpop.permute.xlu0 %191
    %193 = vrot.lane.b32.xlu0 %v186, 124
    %v194 = vpop.permute.xlu0 %193
    %v195 = vadd.f32 %v188, %v192
    %v196 = vadd.f32 %v190, %v194
    %v197 = vsub.f32 %v188, %v192
    %v198 = vand.u32 2147483647, %v197
    %v199 = vsub.f32 %v190, %v194
    %v200 = vand.u32 2147483647, %v199
    %202 = vset.pattern.permute.xlu0 127
    %203 = vperm.xlu0 %202, %v84
    %v204 = vpop.permute.xlu0 %203
    %207 = vset.pattern.permute.xlu0 127
    %208 = vperm.xlu0 %207, %v85
    %v209 = vpop.permute.xlu0 %208
    %v211 = vsel %vm114, %v84, 0
    %v213 = vsel %vm114, %v85, 0
    %215 = vmatpush.msra.mxu0 0.0
    %216 = vmatpush.msra.mxu0 0.0
    %217 = vmatpush.msra.mxu0 0.0
    %218 = vmatpush.msra.mxu0 0.0
    %219 = vmatpush.msra.mxu0 0.0
    %220 = vmatpush.msra.mxu0 0.0
    %221 = vmatpush.msra.mxu0 0.0
    %222 = vmatpush.msra.mxu0 0.0
    %223 = vmatpush.msra.mxu0 0.0
    %224 = vmatpush.msra.mxu0 0.0
    %225 = vmatpush.msra.mxu0 0.0
    %226 = vmatpush.msra.mxu0 %v200
    %227 = vmatpush.msra.mxu0 %v198
    %228 = vmatpush.msra.mxu0 %v196
    %229 = vmatpush.msra.mxu0 %v195
    %230 = vmatpush.msra.mxu0 %v181
    %231 = vmatmul.f32.gmra.mxu0 %v211
    %v232 = vpop.f32.mrf.mxu0
    %v233 = vadd.f32 %v204, %v232
    %234 = vmatmul.f32.gmra.mxu0 %v213
    %v235 = vpop.f32.mrf.mxu0
    %v236 = vadd.f32 %v209, %v235
    %237 = vdwg.mxu0
    %v238 = vmul.f32 %v233, %v48
    %v239 = vmul.f32 %v236, %v48
    %240 = vadd.xlane.f32.xlu0 %v238
    %v241 = vpop.xlane.xlu0 %240
    %242 = vadd.xlane.f32.xlu0 %v239
    %v243 = vpop.xlane.xlu0 %242
    %v244 = vmul.f32 %v238, %v238
    %v245 = vmul.f32 %v239, %v239
    %246 = vadd.xlane.f32.xlu0 %v244
    %v247 = vpop.xlane.xlu0 %246
    %248 = vadd.xlane.f32.xlu0 %v245
    %v249 = vpop.xlane.xlu0 %248
    %v250 = vmul.f32 %v241, 0.083333336
    %v251 = vmul.f32 %v243, 0.083333336
    %v252 = vmul.f32 %v247, 0.083333336
    %v253 = vmul.f32 %v249, 0.083333336
    %v254 = vmul.f32 %v250, %v250
    %v255 = vmul.f32 %v251, %v251
    %v256 = vsub.f32 %v252, %v254
    %v257 = vsub.f32 %v253, %v255
    %v258 = vmax.f32 %v256, 0.0
    %v259 = vmax.f32 %v257, 0.0
    %v260 = vsub.f32 %v238, %v250
    %v261 = vsub.f32 %v239, %v251
    %v262 = vmul.f32 %v260, %v48
    %v263 = vmul.f32 %v261, %v48
    %v264 = vadd.f32 %v258, 1e-05
    %v265 = vadd.f32 %v259, 1e-05
    %v266 = vrsqrt.pop %v264
    %v267 = vmul.f32 %v266, %v264
    %v268 = vmul.f32 %v267, %v266
    %v269 = vmul.f32 0.5, %v268
    %v270 = vsub.f32 1.5, %v269
    %v271 = vmul.f32 %v266, %v270
    %vm272 = vweird.f32 %v264
    %vm273 = vweird.f32 %v266
    %vm274 = vmor %vm272, %vm273
    %v275 = vsel %vm274, %v266, %v271
    %v276 = vrsqrt.pop %v265
    %v277 = vmul.f32 %v276, %v265
    %v278 = vmul.f32 %v277, %v276
    %v279 = vmul.f32 0.5, %v278
    %v280 = vsub.f32 1.5, %v279
    %v281 = vmul.f32 %v276, %v280
    %vm282 = vweird.f32 %v265
    %vm283 = vweird.f32 %v276
    %vm284 = vmor %vm282, %vm283
    %v285 = vsel %vm284, %v276, %v281
    %v286 = vmul.f32 %v262, %v275
    %v287 = vmul.f32 %v263, %v285
    %v288 = vmax.f32 %v286, 0.0
    %v289 = vmax.f32 %v287, 0.0
    %290 = vrot.lane.b32.xlu0 %v288, 12
    %v291 = vpop.permute.xlu0 %290
    %292 = vrot.lane.b32.xlu0 %v289, 12
    %v293 = vpop.permute.xlu0 %292
    %v294 = vsel %vm185, %v288, %v291
    %v295 = vsel %vm185, %v289, %v293
    %296 = vrot.lane.b32.xlu0 %v294, 127
    %v297 = vpop.permute.xlu0 %296
    %298 = vrot.lane.b32.xlu0 %v295, 127
    %v299 = vpop.permute.xlu0 %298
    %300 = vrot.lane.b32.xlu0 %v294, 126
    %v301 = vpop.permute.xlu0 %300
    %302 = vrot.lane.b32.xlu0 %v295, 126
    %v303 = vpop.permute.xlu0 %302
    %304 = vrot.lane.b32.xlu0 %v294, 125
    %v305 = vpop.permute.xlu0 %304
    %306 = vrot.lane.b32.xlu0 %v295, 125
    %v307 = vpop.permute.xlu0 %306
    %308 = vrot.lane.b32.xlu0 %v294, 124
    %v309 = vpop.permute.xlu0 %308
    %310 = vrot.lane.b32.xlu0 %v295, 124
    %v311 = vpop.permute.xlu0 %310
    %v312 = vadd.f32 %v297, %v305
    %v313 = vadd.f32 %v299, %v307
    %v314 = vadd.f32 %v301, %v309
    %v315 = vadd.f32 %v303, %v311
    %v316 = vsub.f32 %v297, %v305
    %v317 = vsub.f32 %v299, %v307
    %v318 = vand.u32 2147483647, %v316
    %v319 = vand.u32 2147483647, %v317
    %v320 = vsub.f32 %v301, %v309
    %v321 = vsub.f32 %v303, %v311
    %v322 = vand.u32 2147483647, %v320
    %v323 = vand.u32 2147483647, %v321
    %325 = vset.pattern.permute.xlu0 127
    %326 = vperm.xlu0 %325, %v86
    %v327 = vpop.permute.xlu0 %326
    %vm329 = vcmask 654336
    %v330 = vsel %vm329, %v86, 0
    %332 = vmatpush.msra.mxu0 0.0
    %333 = vmatpush.msra.mxu0 0.0
    %334 = vmatpush.msra.mxu0 0.0
    %335 = vmatpush.msra.mxu0 0.0
    %336 = vmatpush.msra.mxu0 0.0
    %337 = vmatpush.msra.mxu0 0.0
    %338 = vmatpush.msra.mxu0 %v323
    %339 = vmatpush.msra.mxu0 %v322
    %340 = vmatpush.msra.mxu0 %v319
    %341 = vmatpush.msra.mxu0 %v318
    %342 = vmatpush.msra.mxu0 %v315
    %343 = vmatpush.msra.mxu0 %v314
    %344 = vmatpush.msra.mxu0 %v313
    %345 = vmatpush.msra.mxu0 %v312
    %346 = vmatpush.msra.mxu0 %v289
    %347 = vmatpush.msra.mxu0 %v288
    %348 = vmatmul.f32.gmra.mxu0 %v330
    %v349 = vpop.f32.mrf.mxu0
    %v350 = vadd.f32 %v327, %v349
    %351 = vdwg.mxu0
    %v352 = vmul.f32 %v350, %v48
    %353 = vmatpush.msra.mxu0 %v82
    %354 = vmatpush.msra.mxu0 %v81
    %355 = vmatpush.msra.mxu0 %v80
    %356 = vmatpush.msra.mxu0 %v79
    %357 = vmatpush.msra.mxu0 %v78
    %358 = vmatpush.msra.mxu0 %v77
    %359 = vmatpush.msra.mxu0 %v76
    %360 = vmatpush.msra.mxu0 %v75
    %361 = vmatpush.msra.mxu0 %v74
    %362 = vmatpush.msra.mxu0 %v73
    %363 = vmatpush.msra.mxu0 %v72
    %364 = vmatpush.msra.mxu0 %v71
    %365 = vmatpush.msra.mxu0 %v70
    %366 = vmatpush.msra.mxu0 %v69
    %367 = vmatpush.msra.mxu0 %v68
    %368 = vmatpush.msra.mxu0 %v67
    %369 = vmatmul.f32.gmra.mxu0 %v352
    %v370 = vpop.f32.mrf.mxu0
    %v371 = vadd.f32 0.0, %v370
    %372 = vdwg.mxu0
    %373 = vrot.lane.b32.xlu0 %v371, 16
    %v374 = vpop.permute.xlu0 %373
    %v375 = vsel %vm93, %v371, %v374
    %376 = vrot.lane.b32.xlu0 %v375, 127
    %v377 = vpop.permute.xlu0 %376
    %378 = vrot.lane.b32.xlu0 %v375, 126
    %v379 = vpop.permute.xlu0 %378
    %380 = vrot.lane.b32.xlu0 %v375, 125
    %v381 = vpop.permute.xlu0 %380
    %382 = vrot.lane.b32.xlu0 %v375, 124
    %v383 = vpop.permute.xlu0 %382
    %v384 = vadd.f32 %v377, %v381
    %v385 = vadd.f32 %v379, %v383
    %v386 = vsub.f32 %v377, %v381
    %v387 = vand.u32 2147483647, %v386
    %v388 = vsub.f32 %v379, %v383
    %v389 = vand.u32 2147483647, %v388
    %390 = vrot.lane.b32.xlu0 %v162, 16
    %v391 = vpop.permute.xlu0 %390
    %v392 = vsel %vm93, %v162, %v391
    %393 = vrot.lane.b32.xlu0 %v392, 127
    %v394 = vpop.permute.xlu0 %393
    %395 = vrot.lane.b32.xlu0 %v392, 126
    %v396 = vpop.permute.xlu0 %395
    %397 = vrot.lane.b32.xlu0 %v392, 125
    %v398 = vpop.permute.xlu0 %397
    %399 = vrot.lane.b32.xlu0 %v392, 124
    %v400 = vpop.permute.xlu0 %399
    %v401 = vadd.f32 %v394, %v398
    %v402 = vadd.f32 %v396, %v400
    %v403 = vsub.f32 %v394, %v398
    %v404 = vand.u32 2147483647, %v403
    %v405 = vsub.f32 %v396, %v400
    %v406 = vand.u32 2147483647, %v405
    %408 = vrot.lane.b32.xlu0 %v87, 88
    %v409 = vpop.permute.xlu0 %408
    %v410 = vsel %vm114, %v409, 0
    %412 = vmatpush.msra.mxu0 0.0
    %413 = vmatpush.msra.mxu0 0.0
    %414 = vmatpush.msra.mxu0 0.0
    %415 = vmatpush.msra.mxu0 0.0
    %416 = vmatpush.msra.mxu0 0.0
    %417 = vmatpush.msra.mxu0 0.0
    %418 = vmatpush.msra.mxu0 0.0
    %419 = vmatpush.msra.mxu0 0.0
    %420 = vmatpush.msra.mxu0 0.0
    %421 = vmatpush.msra.mxu0 0.0
    %422 = vmatpush.msra.mxu0 0.0
    %423 = vmatpush.msra.mxu0 %v406
    %424 = vmatpush.msra.mxu0 %v404
    %425 = vmatpush.msra.mxu0 %v402
    %426 = vmatpush.msra.mxu0 %v401
    %427 = vmatpush.msra.mxu0 %v162
    %428 = vmatmul.f32.gmra.mxu0 %v410
    %v429 = vpop.f32.mrf.mxu0
    %v430 = vadd.f32 0.0, %v429
    %431 = vdwg.mxu0
    %v432 = vsel %vm114, %v87, 0
    %434 = vmatpush.msra.mxu0 0.0
    %435 = vmatpush.msra.mxu0 0.0
    %436 = vmatpush.msra.mxu0 0.0
    %437 = vmatpush.msra.mxu0 0.0
    %438 = vmatpush.msra.mxu0 0.0
    %439 = vmatpush.msra.mxu0 0.0
    %440 = vmatpush.msra.mxu0 0.0
    %441 = vmatpush.msra.mxu0 0.0
    %442 = vmatpush.msra.mxu0 0.0
    %443 = vmatpush.msra.mxu0 0.0
    %444 = vmatpush.msra.mxu0 0.0
    %445 = vmatpush.msra.mxu0 %v389
    %446 = vmatpush.msra.mxu0 %v387
    %447 = vmatpush.msra.mxu0 %v385
    %448 = vmatpush.msra.mxu0 %v384
    %449 = vmatpush.msra.mxu0 %v371
    %450 = vmatmul.f32.gmra.mxu0 %v432
    %v451 = vpop.f32.mrf.mxu0
    %v452 = vadd.f32 %v430, %v451
    %453 = vdwg.mxu0
    %454 = vset.pattern.permute.xlu0 127
    %455 = vperm.xlu0 %454, %v87
    %v456 = vpop.permute.xlu0 %455
    %v458 = vadd.f32 %v452, %v456
    %v459 = vmul.f32 %v458, %v50
    %460 = vadd.xlane.f32.xlu0 %v459
    %v461 = vpop.xlane.xlu0 %460
    %v462 = vmul.f32 %v459, %v459
    %463 = vadd.xlane.f32.xlu0 %v462
    %v464 = vpop.xlane.xlu0 %463
    %v465 = vmul.f32 %v461, 0.0625
    %v466 = vmul.f32 %v464, 0.0625
    %v467 = vmul.f32 %v465, %v465
    %v468 = vsub.f32 %v466, %v467
    %v469 = vmax.f32 %v468, 0.0
    %v470 = vsub.f32 %v459, %v465
    %v471 = vmul.f32 %v470, %v50
    %v472 = vadd.f32 %v469, 1e-05
    %v473 = vrsqrt.pop %v472
    %v474 = vmul.f32 %v473, %v472
    %v475 = vmul.f32 %v474, %v473
    %v476 = vmul.f32 0.5, %v475
    %v477 = vsub.f32 1.5, %v476
    %v478 = vmul.f32 %v473, %v477
    %vm479 = vweird.f32 %v472
    %vm480 = vweird.f32 %v473
    %vm481 = vmor %vm479, %vm480
    %v482 = vsel %vm481, %v473, %v478
    %v483 = vmul.f32 %v471, %v482
    %v484 = vmax.f32 %v483, 0.0
    %485 = vrot.lane.b32.xlu0 %v484, 16
    %v486 = vpop.permute.xlu0 %485
    %v487 = vsel %vm93, %v484, %v486
    %488 = vrot.lane.b32.xlu0 %v487, 127
    %v489 = vpop.permute.xlu0 %488
    %490 = vrot.lane.b32.xlu0 %v487, 126
    %v491 = vpop.permute.xlu0 %490
    %492 = vrot.lane.b32.xlu0 %v487, 125
    %v493 = vpop.permute.xlu0 %492
    %494 = vrot.lane.b32.xlu0 %v487, 124
    %v495 = vpop.permute.xlu0 %494
    %v496 = vadd.f32 %v489, %v493
    %v497 = vadd.f32 %v491, %v495
    %v498 = vsub.f32 %v489, %v493
    %v499 = vand.u32 2147483647, %v498
    %v500 = vsub.f32 %v491, %v495
    %v501 = vand.u32 2147483647, %v500
    %503 = vset.pattern.permute.xlu0 127
    %504 = vperm.xlu0 %503, %v88
    %v505 = vpop.permute.xlu0 %504
    %v507 = vsel %vm114, %v88, 0
    %509 = vmatpush.msra.mxu0 0.0
    %510 = vmatpush.msra.mxu0 0.0
    %511 = vmatpush.msra.mxu0 0.0
    %512 = vmatpush.msra.mxu0 0.0
    %513 = vmatpush.msra.mxu0 0.0
    %514 = vmatpush.msra.mxu0 0.0
    %515 = vmatpush.msra.mxu0 0.0
    %516 = vmatpush.msra.mxu0 0.0
    %517 = vmatpush.msra.mxu0 0.0
    %518 = vmatpush.msra.mxu0 0.0
    %519 = vmatpush.msra.mxu0 0.0
    %520 = vmatpush.msra.mxu0 %v501
    %521 = vmatpush.msra.mxu0 %v499
    %522 = vmatpush.msra.mxu0 %v497
    %523 = vmatpush.msra.mxu0 %v496
    %524 = vmatpush.msra.mxu0 %v484
    %525 = vmatmul.f32.gmra.mxu0 %v507
    %v526 = vpop.f32.mrf.mxu0
    %v527 = vadd.f32 %v505, %v526
    %528 = vdwg.mxu0
    %v529 = vmul.f32 %v527, %v50
    %530 = vrot.lane.b32.xlu0 %v529, 16
    %v531 = vpop.permute.xlu0 %530
    %v532 = vsel %vm93, %v529, %v531
    %533 = vrot.lane.b32.xlu0 %v532, 127
    %v534 = vpop.permute.xlu0 %533
    %535 = vrot.lane.b32.xlu0 %v532, 126
    %v536 = vpop.permute.xlu0 %535
    %537 = vrot.lane.b32.xlu0 %v532, 125
    %v538 = vpop.permute.xlu0 %537
    %539 = vrot.lane.b32.xlu0 %v532, 124
    %v540 = vpop.permute.xlu0 %539
    %v541 = vadd.f32 %v534, %v538
    %v542 = vadd.f32 %v536, %v540
    %v543 = vsub.f32 %v534, %v538
    %v544 = vand.u32 2147483647, %v543
    %v545 = vsub.f32 %v536, %v540
    %v546 = vand.u32 2147483647, %v545
    %548 = vset.pattern.permute.xlu0 127
    %549 = vperm.xlu0 %548, %v89
    %v550 = vpop.permute.xlu0 %549
    %v552 = vsel %vm114, %v89, 0
    %554 = vmatpush.msra.mxu0 0.0
    %555 = vmatpush.msra.mxu0 0.0
    %556 = vmatpush.msra.mxu0 0.0
    %557 = vmatpush.msra.mxu0 0.0
    %558 = vmatpush.msra.mxu0 0.0
    %559 = vmatpush.msra.mxu0 0.0
    %560 = vmatpush.msra.mxu0 0.0
    %561 = vmatpush.msra.mxu0 0.0
    %562 = vmatpush.msra.mxu0 0.0
    %563 = vmatpush.msra.mxu0 0.0
    %564 = vmatpush.msra.mxu0 0.0
    %565 = vmatpush.msra.mxu0 %v546
    %566 = vmatpush.msra.mxu0 %v544
    %567 = vmatpush.msra.mxu0 %v542
    %568 = vmatpush.msra.mxu0 %v541
    %569 = vmatpush.msra.mxu0 %v529
    %570 = vmatmul.f32.gmra.mxu0 %v552
    %v571 = vpop.f32.mrf.mxu0
    %v572 = vadd.f32 %v550, %v571
    %573 = vdwg.mxu0
    %v574 = vmul.f32 %v572, %v50
    %575 = vadd.xlane.f32.xlu0 %v574
    %v576 = vpop.xlane.xlu0 %575
    %v577 = vmul.f32 %v574, %v574
    %578 = vadd.xlane.f32.xlu0 %v577
    %v579 = vpop.xlane.xlu0 %578
    %v580 = vmul.f32 %v576, 0.0625
    %v581 = vmul.f32 %v579, 0.0625
    %v582 = vmul.f32 %v580, %v580
    %v583 = vsub.f32 %v581, %v582
    %v584 = vmax.f32 %v583, 0.0
    %v585 = vsub.f32 %v574, %v580
    %v586 = vmul.f32 %v585, %v50
    %v587 = vadd.f32 %v584, 1e-05
    %v588 = vrsqrt.pop %v587
    %v589 = vmul.f32 %v588, %v587
    %v590 = vmul.f32 %v589, %v588
    %v591 = vmul.f32 0.5, %v590
    %v592 = vsub.f32 1.5, %v591
    %v593 = vmul.f32 %v588, %v592
    %vm594 = vweird.f32 %v587
    %vm595 = vweird.f32 %v588
    %vm596 = vmor %vm594, %vm595
    %v597 = vsel %vm596, %v588, %v593
    %v598 = vmul.f32 %v586, %v597
    %v599 = vmax.f32 %v598, 0.0
    %600 = vst [vmem:[%s2] sm:$0xff] %v599
    %s601 = scalar_lea.vmem [#allocation2], 8
    %v602 = vld [vmem:[%s601] sm:$0xff]
    %603 = vrot.lane.b32.xlu0 %v602, 16
    %v604 = vpop.permute.xlu0 %603
    %v605 = vsel %vm93, %v602, %v604
    %606 = vrot.lane.b32.xlu0 %v605, 127
    %v607 = vpop.permute.xlu0 %606
    %608 = vrot.lane.b32.xlu0 %v605, 126
    %v609 = vpop.permute.xlu0 %608
    %610 = vrot.lane.b32.xlu0 %v605, 125
    %v611 = vpop.permute.xlu0 %610
    %612 = vrot.lane.b32.xlu0 %v605, 124
    %v613 = vpop.permute.xlu0 %612
    %v614 = vadd.f32 %v607, %v611
    %v615 = vadd.f32 %v609, %v613
    %v616 = vsub.f32 %v607, %v611
    %v617 = vand.u32 2147483647, %v616
    %v618 = vsub.f32 %v609, %v613
    %v619 = vand.u32 2147483647, %v618
    %620 = vmatpush.msra.mxu0 0.0
    %621 = vmatpush.msra.mxu0 0.0
    %622 = vmatpush.msra.mxu0 0.0
    %623 = vmatpush.msra.mxu0 0.0
    %624 = vmatpush.msra.mxu0 0.0
    %625 = vmatpush.msra.mxu0 0.0
    %626 = vmatpush.msra.mxu0 0.0
    %627 = vmatpush.msra.mxu0 0.0
    %628 = vmatpush.msra.mxu0 0.0
    %629 = vmatpush.msra.mxu0 0.0
    %630 = vmatpush.msra.mxu0 0.0
    %631 = vmatpush.msra.mxu0 %v619
    %632 = vmatpush.msra.mxu0 %v617
    %633 = vmatpush.msra.mxu0 %v615
    %634 = vmatpush.msra.mxu0 %v614
    %635 = vmatpush.msra.mxu0 %v602
    %636 = vmatmul.f32.gmra.mxu0 %v115
    %v637 = vpop.f32.mrf.mxu0
    %v638 = vadd.f32 %v112, %v637
    %639 = vdwg.mxu0
    %v640 = vmul.f32 %v638, %v50
    %641 = vadd.xlane.f32.xlu0 %v640
    %v642 = vpop.xlane.xlu0 %641
    %v643 = vmul.f32 %v640, %v640
    %644 = vadd.xlane.f32.xlu0 %v643
    %v645 = vpop.xlane.xlu0 %644
    %v646 = vmul.f32 %v642, 0.0625
    %v647 = vmul.f32 %v645, 0.0625
    %v648 = vmul.f32 %v646, %v646
    %v649 = vsub.f32 %v647, %v648
    %v650 = vmax.f32 %v649, 0.0
    %v651 = vsub.f32 %v640, %v646
    %v652 = vmul.f32 %v651, %v50
    %v653 = vadd.f32 %v650, 1e-05
    %v654 = vrsqrt.pop %v653
    %v655 = vmul.f32 %v654, %v653
    %v656 = vmul.f32 %v655, %v654
    %v657 = vmul.f32 0.5, %v656
    %v658 = vsub.f32 1.5, %v657
    %v659 = vmul.f32 %v654, %v658
    %vm660 = vweird.f32 %v653
    %vm661 = vweird.f32 %v654
    %vm662 = vmor %vm660, %vm661
    %v663 = vsel %vm662, %v654, %v659
    %v664 = vmul.f32 %v652, %v663
    %v665 = vmax.f32 %v664, 0.0
    %666 = vmatpush.msra.mxu0 %v66
    %667 = vmatpush.msra.mxu0 %v65
    %668 = vmatpush.msra.mxu0 %v64
    %669 = vmatpush.msra.mxu0 %v63
    %670 = vmatpush.msra.mxu0 %v62
    %671 = vmatpush.msra.mxu0 %v61
    %672 = vmatpush.msra.mxu0 %v60
    %673 = vmatpush.msra.mxu0 %v59
    %674 = vmatpush.msra.mxu0 %v58
    %675 = vmatpush.msra.mxu0 %v57
    %676 = vmatpush.msra.mxu0 %v56
    %677 = vmatpush.msra.mxu0 %v55
    %678 = vmatpush.msra.mxu0 %v54
    %679 = vmatpush.msra.mxu0 %v53
    %680 = vmatpush.msra.mxu0 %v52
    %681 = vmatpush.msra.mxu0 %v51
    %682 = vmatmul.f32.gmra.mxu0 %v665
    %v683 = vpop.f32.mrf.mxu0
    %v684 = vadd.f32 0.0, %v683
    %685 = vdwg.mxu0
    %686 = vrot.lane.b32.xlu0 %v684, 12
    %v687 = vpop.permute.xlu0 %686
    %v688 = vsel %vm185, %v684, %v687
    %689 = vrot.lane.b32.xlu0 %v688, 127
    %v690 = vpop.permute.xlu0 %689
    %691 = vrot.lane.b32.xlu0 %v688, 126
    %v692 = vpop.permute.xlu0 %691
    %693 = vrot.lane.b32.xlu0 %v688, 125
    %v694 = vpop.permute.xlu0 %693
    %695 = vrot.lane.b32.xlu0 %v688, 124
    %v696 = vpop.permute.xlu0 %695
    %v697 = vadd.f32 %v690, %v694
    %v698 = vadd.f32 %v692, %v696
    %v699 = vsub.f32 %v690, %v694
    %v700 = vand.u32 2147483647, %v699
    %v701 = vsub.f32 %v692, %v696
    %v702 = vand.u32 2147483647, %v701
    %703 = vmatpush.msra.mxu0 0.0
    %704 = vmatpush.msra.mxu0 0.0
    %705 = vmatpush.msra.mxu0 0.0
    %706 = vmatpush.msra.mxu0 0.0
    %707 = vmatpush.msra.mxu0 0.0
    %708 = vmatpush.msra.mxu0 0.0
    %709 = vmatpush.msra.mxu0 0.0
    %710 = vmatpush.msra.mxu0 0.0
    %711 = vmatpush.msra.mxu0 0.0
    %712 = vmatpush.msra.mxu0 0.0
    %713 = vmatpush.msra.mxu0 0.0
    %714 = vmatpush.msra.mxu0 %v702
    %715 = vmatpush.msra.mxu0 %v700
    %716 = vmatpush.msra.mxu0 %v698
    %717 = vmatpush.msra.mxu0 %v697
    %718 = vmatpush.msra.mxu0 %v684
    %719 = vmatmul.f32.gmra.mxu0 %v211
    %v720 = vpop.f32.mrf.mxu0
    %v721 = vadd.f32 %v204, %v720
    %722 = vmatmul.f32.gmra.mxu0 %v213
    %v723 = vpop.f32.mrf.mxu0
    %v724 = vadd.f32 %v209, %v723
    %725 = vdwg.mxu0
    %v726 = vmul.f32 %v721, %v48
    %v727 = vmul.f32 %v724, %v48
    %728 = vadd.xlane.f32.xlu0 %v726
    %v729 = vpop.xlane.xlu0 %728
    %730 = vadd.xlane.f32.xlu0 %v727
    %v731 = vpop.xlane.xlu0 %730
    %v732 = vmul.f32 %v726, %v726
    %v733 = vmul.f32 %v727, %v727
    %734 = vadd.xlane.f32.xlu0 %v732
    %v735 = vpop.xlane.xlu0 %734
    %736 = vadd.xlane.f32.xlu0 %v733
    %v737 = vpop.xlane.xlu0 %736
    %v738 = vmul.f32 %v729, 0.083333336
    %v739 = vmul.f32 %v731, 0.083333336
    %v740 = vmul.f32 %v735, 0.083333336
    %v741 = vmul.f32 %v737, 0.083333336
    %v742 = vmul.f32 %v738, %v738
    %v743 = vmul.f32 %v739, %v739
    %v744 = vsub.f32 %v740, %v742
    %v745 = vsub.f32 %v741, %v743
    %v746 = vmax.f32 %v744, 0.0
    %v747 = vmax.f32 %v745, 0.0
    %v748 = vsub.f32 %v726, %v738
    %v749 = vsub.f32 %v727, %v739
    %v750 = vmul.f32 %v748, %v48
    %v751 = vmul.f32 %v749, %v48
    %v752 = vadd.f32 %v746, 1e-05
    %v753 = vadd.f32 %v747, 1e-05
    %v754 = vrsqrt.pop %v752
    %v755 = vmul.f32 %v754, %v752
    %v756 = vmul.f32 %v755, %v754
    %v757 = vmul.f32 0.5, %v756
    %v758 = vsub.f32 1.5, %v757
    %v759 = vmul.f32 %v754, %v758
    %vm760 = vweird.f32 %v752
    %vm761 = vweird.f32 %v754
    %vm762 = vmor %vm760, %vm761
    %v763 = vsel %vm762, %v754, %v759
    %v764 = vrsqrt.pop %v753
    %v765 = vmul.f32 %v764, %v753
    %v766 = vmul.f32 %v765, %v764
    %v767 = vmul.f32 0.5, %v766
    %v768 = vsub.f32 1.5, %v767
    %v769 = vmul.f32 %v764, %v768
    %vm770 = vweird.f32 %v753
    %vm771 = vweird.f32 %v764
    %vm772 = vmor %vm770, %vm771
    %v773 = vsel %vm772, %v764, %v769
    %v774 = vmul.f32 %v750, %v763
    %v775 = vmul.f32 %v751, %v773
    %v776 = vmax.f32 %v774, 0.0
    %v777 = vmax.f32 %v775, 0.0
    %778 = vrot.lane.b32.xlu0 %v776, 12
    %v779 = vpop.permute.xlu0 %778
    %780 = vrot.lane.b32.xlu0 %v777, 12
    %v781 = vpop.permute.xlu0 %780
    %v782 = vsel %vm185, %v776, %v779
    %v783 = vsel %vm185, %v777, %v781
    %784 = vrot.lane.b32.xlu0 %v782, 127
    %v785 = vpop.permute.xlu0 %784
    %786 = vrot.lane.b32.xlu0 %v783, 127
    %v787 = vpop.permute.xlu0 %786
    %788 = vrot.lane.b32.xlu0 %v782, 126
    %v789 = vpop.permute.xlu0 %788
    %790 = vrot.lane.b32.xlu0 %v783, 126
    %v791 = vpop.permute.xlu0 %790
    %792 = vrot.lane.b32.xlu0 %v782, 125
    %v793 = vpop.permute.xlu0 %792
    %794 = vrot.lane.b32.xlu0 %v783, 125
    %v795 = vpop.permute.xlu0 %794
    %796 = vrot.lane.b32.xlu0 %v782, 124
    %v797 = vpop.permute.xlu0 %796
    %798 = vrot.lane.b32.xlu0 %v783, 124
    %v799 = vpop.permute.xlu0 %798
    %v800 = vadd.f32 %v785, %v793
    %v801 = vadd.f32 %v787, %v795
    %v802 = vadd.f32 %v789, %v797
    %v803 = vadd.f32 %v791, %v799
    %v804 = vsub.f32 %v785, %v793
    %v805 = vsub.f32 %v787, %v795
    %v806 = vand.u32 2147483647, %v804
    %v807 = vand.u32 2147483647, %v805
    %v808 = vsub.f32 %v789, %v797
    %v809 = vsub.f32 %v791, %v799
    %v810 = vand.u32 2147483647, %v808
    %v811 = vand.u32 2147483647, %v809
    %812 = vmatpush.msra.mxu0 0.0
    %813 = vmatpush.msra.mxu0 0.0
    %814 = vmatpush.msra.mxu0 0.0
    %815 = vmatpush.msra.mxu0 0.0
    %816 = vmatpush.msra.mxu0 0.0
    %817 = vmatpush.msra.mxu0 0.0
    %818 = vmatpush.msra.mxu0 %v811
    %819 = vmatpush.msra.mxu0 %v810
    %820 = vmatpush.msra.mxu0 %v807
    %821 = vmatpush.msra.mxu0 %v806
    %822 = vmatpush.msra.mxu0 %v803
    %823 = vmatpush.msra.mxu0 %v802
    %824 = vmatpush.msra.mxu0 %v801
    %825 = vmatpush.msra.mxu0 %v800
    %826 = vmatpush.msra.mxu0 %v777
    %827 = vmatpush.msra.mxu0 %v776
    %828 = vmatmul.f32.gmra.mxu0 %v330
    %v829 = vpop.f32.mrf.mxu0
    %v830 = vadd.f32 %v327, %v829
    %831 = vdwg.mxu0
    %v832 = vmul.f32 %v830, %v48
    %833 = vmatpush.msra.mxu0 %v82
    %834 = vmatpush.msra.mxu0 %v81
    %835 = vmatpush.msra.mxu0 %v80
    %836 = vmatpush.msra.mxu0 %v79
    %837 = vmatpush.msra.mxu0 %v78
    %838 = vmatpush.msra.mxu0 %v77
    %839 = vmatpush.msra.mxu0 %v76
    %840 = vmatpush.msra.mxu0 %v75
    %841 = vmatpush.msra.mxu0 %v74
    %842 = vmatpush.msra.mxu0 %v73
    %843 = vmatpush.msra.mxu0 %v72
    %844 = vmatpush.msra.mxu0 %v71
    %845 = vmatpush.msra.mxu0 %v70
    %846 = vmatpush.msra.mxu0 %v69
    %847 = vmatpush.msra.mxu0 %v68
    %848 = vmatpush.msra.mxu0 %v67
    %849 = vmatmul.f32.gmra.mxu0 %v832
    %v850 = vpop.f32.mrf.mxu0
    %v851 = vadd.f32 0.0, %v850
    %852 = vdwg.mxu0
    %853 = vrot.lane.b32.xlu0 %v851, 16
    %v854 = vpop.permute.xlu0 %853
    %v855 = vsel %vm93, %v851, %v854
    %856 = vrot.lane.b32.xlu0 %v855, 127
    %v857 = vpop.permute.xlu0 %856
    %858 = vrot.lane.b32.xlu0 %v855, 126
    %v859 = vpop.permute.xlu0 %858
    %860 = vrot.lane.b32.xlu0 %v855, 125
    %v861 = vpop.permute.xlu0 %860
    %862 = vrot.lane.b32.xlu0 %v855, 124
    %v863 = vpop.permute.xlu0 %862
    %v864 = vadd.f32 %v857, %v861
    %v865 = vadd.f32 %v859, %v863
    %v866 = vsub.f32 %v857, %v861
    %v867 = vand.u32 2147483647, %v866
    %v868 = vsub.f32 %v859, %v863
    %v869 = vand.u32 2147483647, %v868
    %870 = vrot.lane.b32.xlu0 %v665, 16
    %v871 = vpop.permute.xlu0 %870
    %v872 = vsel %vm93, %v665, %v871
    %873 = vrot.lane.b32.xlu0 %v872, 127
    %v874 = vpop.permute.xlu0 %873
    %875 = vrot.lane.b32.xlu0 %v872, 126
    %v876 = vpop.permute.xlu0 %875
    %877 = vrot.lane.b32.xlu0 %v872, 125
    %v878 = vpop.permute.xlu0 %877
    %879 = vrot.lane.b32.xlu0 %v872, 124
    %v880 = vpop.permute.xlu0 %879
    %v881 = vadd.f32 %v874, %v878
    %v882 = vadd.f32 %v876, %v880
    %v883 = vsub.f32 %v874, %v878
    %v884 = vand.u32 2147483647, %v883
    %v885 = vsub.f32 %v876, %v880
    %v886 = vand.u32 2147483647, %v885
    %887 = vmatpush.msra.mxu0 0.0
    %888 = vmatpush.msra.mxu0 0.0
    %889 = vmatpush.msra.mxu0 0.0
    %890 = vmatpush.msra.mxu0 0.0
    %891 = vmatpush.msra.mxu0 0.0
    %892 = vmatpush.msra.mxu0 0.0
    %893 = vmatpush.msra.mxu0 0.0
    %894 = vmatpush.msra.mxu0 0.0
    %895 = vmatpush.msra.mxu0 0.0
    %896 = vmatpush.msra.mxu0 0.0
    %897 = vmatpush.msra.mxu0 0.0
    %898 = vmatpush.msra.mxu0 %v886
    %899 = vmatpush.msra.mxu0 %v884
    %900 = vmatpush.msra.mxu0 %v882
    %901 = vmatpush.msra.mxu0 %v881
    %902 = vmatpush.msra.mxu0 %v665
    %903 = vmatmul.f32.gmra.mxu0 %v410
    %v904 = vpop.f32.mrf.mxu0
    %v905 = vadd.f32 0.0, %v904
    %906 = vdwg.mxu0
    %907 = vmatpush.msra.mxu0 0.0
    %908 = vmatpush.msra.mxu0 0.0
    %909 = vmatpush.msra.mxu0 0.0
    %910 = vmatpush.msra.mxu0 0.0
    %911 = vmatpush.msra.mxu0 0.0
    %912 = vmatpush.msra.mxu0 0.0
    %913 = vmatpush.msra.mxu0 0.0
    %914 = vmatpush.msra.mxu0 0.0
    %915 = vmatpush.msra.mxu0 0.0
    %916 = vmatpush.msra.mxu0 0.0
    %917 = vmatpush.msra.mxu0 0.0
    %918 = vmatpush.msra.mxu0 %v869
    %919 = vmatpush.msra.mxu0 %v867
    %920 = vmatpush.msra.mxu0 %v865
    %921 = vmatpush.msra.mxu0 %v864
    %922 = vmatpush.msra.mxu0 %v851
    %923 = vmatmul.f32.gmra.mxu0 %v432
    %v924 = vpop.f32.mrf.mxu0
    %v925 = vadd.f32 %v905, %v924
    %926 = vdwg.mxu0
    %v927 = vadd.f32 %v925, %v456
    %v928 = vmul.f32 %v927, %v50
    %929 = vadd.xlane.f32.xlu0 %v928
    %v930 = vpop.xlane.xlu0 %929
    %v931 = vmul.f32 %v928, %v928
    %932 = vadd.xlane.f32.xlu0 %v931
    %v933 = vpop.xlane.xlu0 %932
    %v934 = vmul.f32 %v930, 0.0625
    %v935 = vmul.f32 %v933, 0.0625
    %v936 = vmul.f32 %v934, %v934
    %v937 = vsub.f32 %v935, %v936
    %v938 = vmax.f32 %v937, 0.0
    %v939 = vsub.f32 %v928, %v934
    %v940 = vmul.f32 %v939, %v50
    %v941 = vadd.f32 %v938, 1e-05
    %v942 = vrsqrt.pop %v941
    %v943 = vmul.f32 %v942, %v941
    %v944 = vmul.f32 %v943, %v942
    %v945 = vmul.f32 0.5, %v944
    %v946 = vsub.f32 1.5, %v945
    %v947 = vmul.f32 %v942, %v946
    %vm948 = vweird.f32 %v941
    %vm949 = vweird.f32 %v942
    %vm950 = vmor %vm948, %vm949
    %v951 = vsel %vm950, %v942, %v947
    %v952 = vmul.f32 %v940, %v951
    %v953 = vmax.f32 %v952, 0.0
    %954 = vrot.lane.b32.xlu0 %v953, 16
    %v955 = vpop.permute.xlu0 %954
    %v956 = vsel %vm93, %v953, %v955
    %957 = vrot.lane.b32.xlu0 %v956, 127
    %v958 = vpop.permute.xlu0 %957
    %959 = vrot.lane.b32.xlu0 %v956, 126
    %v960 = vpop.permute.xlu0 %959
    %961 = vrot.lane.b32.xlu0 %v956, 125
    %v962 = vpop.permute.xlu0 %961
    %963 = vrot.lane.b32.xlu0 %v956, 124
    %v964 = vpop.permute.xlu0 %963
    %v965 = vadd.f32 %v958, %v962
    %v966 = vadd.f32 %v960, %v964
    %v967 = vsub.f32 %v958, %v962
    %v968 = vand.u32 2147483647, %v967
    %v969 = vsub.f32 %v960, %v964
    %v970 = vand.u32 2147483647, %v969
    %971 = vmatpush.msra.mxu0 0.0
    %972 = vmatpush.msra.mxu0 0.0
    %973 = vmatpush.msra.mxu0 0.0
    %974 = vmatpush.msra.mxu0 0.0
    %975 = vmatpush.msra.mxu0 0.0
    %976 = vmatpush.msra.mxu0 0.0
    %977 = vmatpush.msra.mxu0 0.0
    %978 = vmatpush.msra.mxu0 0.0
    %979 = vmatpush.msra.mxu0 0.0
    %980 = vmatpush.msra.mxu0 0.0
    %981 = vmatpush.msra.mxu0 0.0
    %982 = vmatpush.msra.mxu0 %v970
    %983 = vmatpush.msra.mxu0 %v968
    %984 = vmatpush.msra.mxu0 %v966
    %985 = vmatpush.msra.mxu0 %v965
    %986 = vmatpush.msra.mxu0 %v953
    %987 = vmatmul.f32.gmra.mxu0 %v507
    %v988 = vpop.f32.mrf.mxu0
    %v989 = vadd.f32 %v505, %v988
    %990 = vdwg.mxu0
    %v991 = vmul.f32 %v989, %v50
    %992 = vrot.lane.b32.xlu0 %v991, 16
    %v993 = vpop.permute.xlu0 %992
    %v994 = vsel %vm93, %v991, %v993
    %995 = vrot.lane.b32.xlu0 %v994, 127
    %v996 = vpop.permute.xlu0 %995
    %997 = vrot.lane.b32.xlu0 %v994, 126
    %v998 = vpop.permute.xlu0 %997
    %999 = vrot.lane.b32.xlu0 %v994, 125
    %v1000 = vpop.permute.xlu0 %999
    %1001 = vrot.lane.b32.xlu0 %v994, 124
    %v1002 = vpop.permute.xlu0 %1001
    %v1003 = vadd.f32 %v996, %v1000
    %v1004 = vadd.f32 %v998, %v1002
    %v1005 = vsub.f32 %v996, %v1000
    %v1006 = vand.u32 2147483647, %v1005
    %v1007 = vsub.f32 %v998, %v1002
    %v1008 = vand.u32 2147483647, %v1007
    %1009 = vmatpush.msra.mxu0 0.0
    %1010 = vmatpush.msra.mxu0 0.0
    %1011 = vmatpush.msra.mxu0 0.0
    %1012 = vmatpush.msra.mxu0 0.0
    %1013 = vmatpush.msra.mxu0 0.0
    %1014 = vmatpush.msra.mxu0 0.0
    %1015 = vmatpush.msra.mxu0 0.0
    %1016 = vmatpush.msra.mxu0 0.0
    %1017 = vmatpush.msra.mxu0 0.0
    %1018 = vmatpush.msra.mxu0 0.0
    %1019 = vmatpush.msra.mxu0 0.0
    %1020 = vmatpush.msra.mxu0 %v1008
    %1021 = vmatpush.msra.mxu0 %v1006
    %1022 = vmatpush.msra.mxu0 %v1004
    %1023 = vmatpush.msra.mxu0 %v1003
    %1024 = vmatpush.msra.mxu0 %v991
    %1025 = vmatmul.f32.gmra.mxu0 %v552
    %v1026 = vpop.f32.mrf.mxu0
    %v1027 = vadd.f32 %v550, %v1026
    %1028 = vdwg.mxu0
    %v1029 = vmul.f32 %v1027, %v50
    %1030 = vadd.xlane.f32.xlu0 %v1029
    %v1031 = vpop.xlane.xlu0 %1030
    %v1032 = vmul.f32 %v1029, %v1029
    %1033 = vadd.xlane.f32.xlu0 %v1032
    %v1034 = vpop.xlane.xlu0 %1033
    %v1035 = vmul.f32 %v1031, 0.0625
    %v1036 = vmul.f32 %v1034, 0.0625
    %v1037 = vmul.f32 %v1035, %v1035
    %v1038 = vsub.f32 %v1036, %v1037
    %v1039 = vmax.f32 %v1038, 0.0
    %v1040 = vsub.f32 %v1029, %v1035
    %v1041 = vmul.f32 %v1040, %v50
    %v1042 = vadd.f32 %v1039, 1e-05
    %v1043 = vrsqrt.pop %v1042
    %v1044 = vmul.f32 %v1043, %v1042
    %v1045 = vmul.f32 %v1044, %v1043
    %v1046 = vmul.f32 0.5, %v1045
    %v1047 = vsub.f32 1.5, %v1046
    %v1048 = vmul.f32 %v1043, %v1047
    %vm1049 = vweird.f32 %v1042
    %vm1050 = vweird.f32 %v1043
    %vm1051 = vmor %vm1049, %vm1050
    %v1052 = vsel %vm1051, %v1043, %v1048
    %v1053 = vmul.f32 %v1041, %v1052
    %v1054 = vmax.f32 %v1053, 0.0
    %s1055 = scalar_lea.vmem %s2, 8
    %1056 = vst [vmem:[%s1055] sm:$0xff] %v1054
    // Predicated region
    $region18: #{mesh_encoder_decoder.1} parent=1 // pred_check
      _
    $region19: #{mesh_encoder_decoder.1} parent=1 // pred_check_branch
      %1058 = sbr.rel (0) target = $region21
    $region20: #{mesh_encoder_decoder.1} parent=1 // pred_region
      _
    $region21: #{mesh_encoder_decoder.1} parent=1 // pred_fallthru
      _
    // Predicated region
    $region22: #{mesh_encoder_decoder.1} parent=1 // pred_check
      _
    $region23: #{mesh_encoder_decoder.1} parent=1 // pred_check_branch
      %1060 = sbr.rel (0) target = $region25
    $region24: #{mesh_encoder_decoder.1} parent=1 // pred_region
      _
    $region25: #{mesh_encoder_decoder.1} parent=1 // pred_fallthru
      _
    %1061 = vsyncpa [#allocation3], 1
    %1062 = vsyncpa [#allocation5], 1

</llo_original>
